<compile_context>
chip_gen: v6e
topology: v6e:2x2x1
jax: 0.10.0
libtpu: 0.0.40
codegen_flags: <defaults>
</compile_context>

<pallas_src>
import math
from functools import partial

import jax
import jax.numpy as jnp
from jax.experimental import pallas as pl
from jax.experimental.pallas import tpu as pltpu

_EPS = 1e-5
_INV_SQRT2 = 1.0 / math.sqrt(2.0)


# ----------------------------- in-kernel helpers -----------------------------

def _layernorm_f32(x, g, b):
    # x: (rows, C) f32; g, b: (1, C). eps=1e-5 matches nn.LayerNorm.
    mu = jnp.mean(x, axis=-1, keepdims=True)
    xc = x - mu
    var = jnp.mean(xc * xc, axis=-1, keepdims=True)
    return xc * jax.lax.rsqrt(var + _EPS) * g + b


# ----------------------------- Pallas kernels -----------------------------

def _ln_linear_kernel(x_ref, g_ref, b_ref, w_ref, wb_ref, o_ref):
    # o = LN(x) @ w + wb        (LN as prologue of the MXU matmul; one HBM round trip)
    x = x_ref[...].astype(jnp.float32)
    y = _layernorm_f32(x, g_ref[...].astype(jnp.float32), b_ref[...].astype(jnp.float32))
    acc = jnp.dot(y, w_ref[...].astype(jnp.float32), preferred_element_type=jnp.float32)
    o_ref[...] = (acc + wb_ref[...].astype(jnp.float32)).astype(o_ref.dtype)


def _linear_kernel(x_ref, w_ref, b_ref, o_ref):
    # o = x @ w + b
    acc = jnp.dot(x_ref[...].astype(jnp.float32), w_ref[...].astype(jnp.float32),
                  preferred_element_type=jnp.float32)
    o_ref[...] = (acc + b_ref[...].astype(jnp.float32)).astype(o_ref.dtype)


def _attn_block_kernel(h_ref, g_ref, b_ref, wq_ref, wk_ref, wv_ref, wo_ref, bo_ref,
                       o_ref, *, heads, d_head, scale):
    # One batch per grid step: out = h + to_out(softmax(Q K^T) V), Q/K/V from LN(h).
    h = h_ref[0].astype(jnp.float32)                               # (T, inner)
    n = _layernorm_f32(h, g_ref[...].astype(jnp.float32), b_ref[...].astype(jnp.float32))

    # Bias-free Q/K/V projections (matches nn.Linear(bias=False)); softmax scale folded
    # into q (O(T*inner) instead of O(T*T*heads) VALU work).
    q = jnp.dot(n, wq_ref[...], preferred_element_type=jnp.float32) * scale
    k = jnp.dot(n, wk_ref[...], preferred_element_type=jnp.float32)
    v = jnp.dot(n, wv_ref[...], preferred_element_type=jnp.float32)

    wo = wo_ref[...].astype(jnp.float32)                           # (inner, inner)
    out = jnp.zeros(h.shape, jnp.float32)                          # (T, inner)
    for hd in range(heads):                                        # static unroll over heads
        lo, hi = hd * d_head, (hd + 1) * d_head
        qh, kh, vh = q[:, lo:hi], k[:, lo:hi], v[:, lo:hi]
        sim = jax.lax.dot_general(qh, kh, (((1,), (1,)), ((), ())),
                                  preferred_element_type=jnp.float32)      # (T, T)
        m = jnp.max(sim, axis=-1, keepdims=True)
        p = jnp.exp(sim - m)
        attn = p / jnp.sum(p, axis=-1, keepdims=True)
        oh = jnp.dot(attn, vh, preferred_element_type=jnp.float32)         # (T, d_head)
        # head-merge fused with the output projection: sum_h o_h @ Wo[hd*D:(hd+1)*D, :]
        out = out + jnp.dot(oh, wo[lo:hi, :], preferred_element_type=jnp.float32)
    out = out + bo_ref[...].astype(jnp.float32)
    o_ref[0] = (out + h).astype(o_ref.dtype)                       # residual fused


def _ff_block_kernel(h_ref, g_ref, b_ref, w1_ref, b1_ref, w2_ref, b2_ref, o_ref, *, hidden):
    # out = h + FF2(GEGLU(FF1(LN(h))))      (GEGLU split done on the in-VMEM tile)
    h = h_ref[...].astype(jnp.float32)                             # (TM, inner)
    n = _layernorm_f32(h, g_ref[...].astype(jnp.float32), b_ref[...].astype(jnp.float32))
    proj = jnp.dot(n, w1_ref[...], preferred_element_type=jnp.float32)
    proj = proj + b1_ref[...].astype(jnp.float32)                  # (TM, 2*hidden)
    xh = proj[:, :hidden]
    gate = proj[:, hidden:]
    gelu_gate = 0.5 * gate * (1.0 + jax.lax.erf(gate * jnp.float32(_INV_SQRT2)))  # exact GELU
    ff = xh * gelu_gate                                            # (TM, hidden)
    out = jnp.dot(ff, w2_ref[...], preferred_element_type=jnp.float32)
    out = out + b2_ref[...].astype(jnp.float32)
    o_ref[...] = (out + h).astype(o_ref.dtype)                     # residual fused


# ----------------------------- pallas_call wrappers -----------------------------

_PARALLEL_1D = pltpu.CompilerParams(dimension_semantics=("parallel",))


def _pick_row_tile(M, cap=512):
    """Largest row tile <= cap; full M when it already fits one block."""
    return M if M <= cap else cap


def fused_ln_linear(x2d, g, b, w, wb, tm):
    M, C = x2d.shape
    cout = w.shape[1]
    return pl.pallas_call(
        _ln_linear_kernel,
        out_shape=jax.ShapeDtypeStruct((M, cout), x2d.dtype),
        grid=(pl.cdiv(M, tm),),
        in_specs=[
            pl.BlockSpec((tm, C), lambda i: (i, 0)),
            pl.BlockSpec((1, C), lambda i: (0, 0)),
            pl.BlockSpec((1, C), lambda i: (0, 0)),
            pl.BlockSpec((C, cout), lambda i: (0, 0)),      # resident weight across row grid
            pl.BlockSpec((1, cout), lambda i: (0, 0)),
        ],
        out_specs=pl.BlockSpec((tm, cout), lambda i: (i, 0)),
        compiler_params=_PARALLEL_1D,
    )(x2d, g.reshape(1, C), b.reshape(1, C), w, wb.reshape(1, cout))


def linear(x2d, w, b, tm):
    M, cin = x2d.shape
    cout = w.shape[1]
    return pl.pallas_call(
        _linear_kernel,
        out_shape=jax.ShapeDtypeStruct((M, cout), x2d.dtype),
        grid=(pl.cdiv(M, tm),),
        in_specs=[
            pl.BlockSpec((tm, cin), lambda i: (i, 0)),
            pl.BlockSpec((cin, cout), lambda i: (0, 0)),
            pl.BlockSpec((1, cout), lambda i: (0, 0)),
        ],
        out_specs=pl.BlockSpec((tm, cout), lambda i: (i, 0)),
        compiler_params=_PARALLEL_1D,
    )(x2d, w, b.reshape(1, cout))


def attn_block(h3d, g, b, wq, wk, wv, wo, bo, heads, d_head):
    B, T, inner = h3d.shape
    kern = partial(_attn_block_kernel, heads=heads, d_head=d_head, scale=d_head ** -0.5)
    full = lambda bb: (0, 0)
    return pl.pallas_call(
        kern,
        out_shape=jax.ShapeDtypeStruct((B, T, inner), h3d.dtype),
        grid=(B,),
        in_specs=[
            pl.BlockSpec((1, T, inner), lambda bb: (bb, 0, 0)),
            pl.BlockSpec((1, inner), full),            # norm gamma
            pl.BlockSpec((1, inner), full),            # norm beta
            pl.BlockSpec((inner, inner), full),        # Wq (resident)
            pl.BlockSpec((inner, inner), full),        # Wk
            pl.BlockSpec((inner, inner), full),        # Wv
            pl.BlockSpec((inner, inner), full),        # Wo
            pl.BlockSpec((1, inner), full),            # bo
        ],
        out_specs=pl.BlockSpec((1, T, inner), lambda bb: (bb, 0, 0)),
        compiler_params=_PARALLEL_1D,
    )(h3d, g.reshape(1, inner), b.reshape(1, inner), wq, wk, wv, wo, bo.reshape(1, inner))


def ff_block(h2d, g, b, w1, b1, w2, b2, tm):
    M, inner = h2d.shape
    two_hidden = w1.shape[1]
    hidden = two_hidden // 2
    kern = partial(_ff_block_kernel, hidden=hidden)
    full = lambda i: (0, 0)
    return pl.pallas_call(
        kern,
        out_shape=jax.ShapeDtypeStruct((M, inner), h2d.dtype),
        grid=(pl.cdiv(M, tm),),
        in_specs=[
            pl.BlockSpec((tm, inner), lambda i: (i, 0)),
            pl.BlockSpec((1, inner), full),
            pl.BlockSpec((1, inner), full),
            pl.BlockSpec((inner, two_hidden), full),   # FF1 weight (resident)
            pl.BlockSpec((1, two_hidden), full),
            pl.BlockSpec((hidden, inner), full),       # FF2 weight (resident)
            pl.BlockSpec((1, inner), full),
        ],
        out_specs=pl.BlockSpec((tm, inner), lambda i: (i, 0)),
        compiler_params=_PARALLEL_1D,
    )(h2d, g.reshape(1, inner), b.reshape(1, inner), w1, b1.reshape(1, two_hidden),
      w2, b2.reshape(1, inner))


# ----------------------------- model glue -----------------------------

def retrieval_patch_transformer(x, params, n_heads, d_head):
    """x: (B, T, C_in) -> (B, T, out_channels)."""
    B, T, C = x.shape
    M = B * T
    inner = n_heads * d_head
    tm = _pick_row_tile(M)

    # continuous branch: LayerNorm(in_channels) fused with proj_in (Conv1d k=1).
    h = fused_ln_linear(x.reshape(M, C), params['norm_g'], params['norm_b'],
                        params['proj_in_w'], params['proj_in_b'], tm)
    # positional_encodings=False (module default) -> nothing added here.
    h = h.reshape(B, T, inner)

    for blk in params['blocks']:
        # x = attn1(norm1(x)) + x    (LN + QKV + attention + to_out + residual, one kernel)
        h = attn_block(h, blk['norm1_g'], blk['norm1_b'],
                       blk['attn1_wq'], blk['attn1_wk'], blk['attn1_wv'],
                       blk['attn1_wo'], blk['attn1_bo'], n_heads, d_head)
        # x = attn2(norm2(x), context=None) + x   (self-attn since context_dim=None)
        h = attn_block(h, blk['norm2_g'], blk['norm2_b'],
                       blk['attn2_wq'], blk['attn2_wk'], blk['attn2_wv'],
                       blk['attn2_wo'], blk['attn2_bo'], n_heads, d_head)
        # x = ff(norm3(x)) + x       (LN + FF1 + GEGLU + FF2 + residual, one kernel)
        h = ff_block(h.reshape(M, inner), blk['norm3_g'], blk['norm3_b'],
                     blk['ff_w1'], blk['ff_b1'], blk['ff_w2'], blk['ff_b2'],
                     tm).reshape(B, T, inner)

    # proj_out (Conv1d k=1 == linear).  residual=False -> no x_in added.
    out = linear(h.reshape(M, inner), params['proj_out_w'], params['proj_out_b'], tm)
    return out.reshape(B, T, params['proj_out_w'].shape[1])


# ----------------------------- parameter init -----------------------------

def init_params(key, in_channels, n_heads, d_head, depth=1, ff_mult=4):
    inner = n_heads * d_head
    keys = iter(jax.random.split(key, 128))

    def w(shape, scale=0.05):
        return scale * jax.random.normal(next(keys), shape, jnp.float32)

    p = {
        'norm_g': jnp.ones((in_channels,), jnp.float32),
        'norm_b': jnp.zeros((in_channels,), jnp.float32),
        'proj_in_w': w((in_channels, inner)),
        'proj_in_b': w((inner,), 0.01),
        'proj_out_w': w((inner, in_channels)),
        'proj_out_b': w((in_channels,), 0.01),
        'blocks': [],
    }
    for _ in range(depth):
        blk = {}
        for n in ('norm1', 'norm2', 'norm3'):
            blk[n + '_g'] = jnp.ones((inner,), jnp.float32)
            blk[n + '_b'] = jnp.zeros((inner,), jnp.float32)
        for a in ('attn1', 'attn2'):
            blk[a + '_wq'] = w((inner, inner))
            blk[a + '_wk'] = w((inner, inner))
            blk[a + '_wv'] = w((inner, inner))
            blk[a + '_wo'] = w((inner, inner))
            blk[a + '_bo'] = w((inner,), 0.01)
        blk['ff_w1'] = w((inner, inner * ff_mult * 2))
        blk['ff_b1'] = w((inner * ff_mult * 2,), 0.01)
        blk['ff_w2'] = w((inner * ff_mult, inner))
        blk['ff_b2'] = w((inner,), 0.01)
        p['blocks'].append(blk)
    return p


# ----------------------------- pure-JAX reference -----------------------------

def _reference(x, params, heads, d_head):
    HI = jax.lax.Precision.HIGHEST

    def ln(t, g, b):
        mu = t.mean(-1, keepdims=True)
        var = ((t - mu) ** 2).mean(-1, keepdims=True)
        return (t - mu) / jnp.sqrt(var + 1e-5) * g + b

    def lin(t, w, b):
        return jnp.dot(t, w, precision=HI) + b

    def attn(t2d, blk, pfx, B, T):
        inner = heads * d_head
        q = jnp.dot(t2d, blk[pfx + '_wq'], precision=HI)
        k = jnp.dot(t2d, blk[pfx + '_wk'], precision=HI)
        v = jnp.dot(t2d, blk[pfx + '_wv'], precision=HI)
        sh = lambda a: a.reshape(B, T, heads, d_head).transpose(0, 2, 1, 3)
        q, k, v = sh(q), sh(k), sh(v)
        sim = jnp.einsum('bhid,bhjd->bhij', q, k, precision=HI) * (d_head ** -0.5)
        a = jax.nn.softmax(sim, axis=-1)
        o = jnp.einsum('bhij,bhjd->bhid', a, v, precision=HI)
        o = o.transpose(0, 2, 1, 3).reshape(B * T, inner)
        return lin(o, blk[pfx + '_wo'], blk[pfx + '_bo'])

    B, T, C = x.shape
    h = ln(x.reshape(B * T, C), params['norm_g'], params['norm_b'])
    h = lin(h, params['proj_in_w'], params['proj_in_b'])
    for blk in params['blocks']:
        h = h + attn(ln(h, blk['norm1_g'], blk['norm1_b']), blk, 'attn1', B, T)
        h = h + attn(ln(h, blk['norm2_g'], blk['norm2_b']), blk, 'attn2', B, T)
        proj = lin(ln(h, blk['norm3_g'], blk['norm3_b']), blk['ff_w1'], blk['ff_b1'])
        xh, gate = jnp.split(proj, 2, axis=-1)
        g = 0.5 * gate * (1.0 + jax.lax.erf(gate / jnp.sqrt(2.0)))
        h = h + lin(xh * g, blk['ff_w2'], blk['ff_b2'])
    out = lin(h, params['proj_out_w'], params['proj_out_b'])
    return out.reshape(B, T, params['proj_out_w'].shape[1])


# ----------------------------- main -----------------------------

if __name__ == "__main__":
    key = jax.random.PRNGKey(0)
    B, T, C = 2, 8, 16          # batch, sequence (patch nns), in_channels
    n_heads, d_head = 2, 16     # inner_dim = 32
    kx, kp = jax.random.split(key)

    x = jax.random.normal(kx, (B, T, C), jnp.float32)
    params = init_params(kp, C, n_heads, d_head, depth=1)

    fwd = jax.jit(retrieval_patch_transformer, static_argnums=(2, 3))
    out = fwd(x, params, n_heads, d_head)
    out = jax.block_until_ready(out)

    ref = _reference(x, params, n_heads, d_head)
    assert out.shape == (B, T, C), out.shape
    err = float(jnp.max(jnp.abs(out - ref)))
    assert err < 2e-3, err

    print("KERNEL_OK")
</pallas_src>

<mosaic_0001>
module attributes {stable_mosaic.version = 11 : i64} {
  func.func @_ln_linear_kernel(%arg0: i32, %arg1: memref<16x16xf32, #tpu.memory_space<vmem>>, %arg2: memref<1x16xf32, #tpu.memory_space<vmem>>, %arg3: memref<1x16xf32, #tpu.memory_space<vmem>>, %arg4: memref<16x32xf32, #tpu.memory_space<vmem>>, %arg5: memref<1x32xf32, #tpu.memory_space<vmem>>, %arg6: memref<16x32xf32, #tpu.memory_space<vmem>>) attributes {dimension_semantics = [#tpu.dimension_semantics<parallel>], iteration_bounds = array<i64: 1>, scalar_prefetch = 0 : i64, scratch_operands = 0 : i64, tpu.core_type = #tpu.core_type<tc>, window_params = [{transform_indices = @transform_0, window_bounds = array<i64: 16, 16>}, {pipeline_mode = #tpu.pipeline_mode<synchronous>, transform_indices = @transform_1, window_bounds = array<i64: 1, 16>}, {pipeline_mode = #tpu.pipeline_mode<synchronous>, transform_indices = @transform_2, window_bounds = array<i64: 1, 16>}, {pipeline_mode = #tpu.pipeline_mode<synchronous>, transform_indices = @transform_3, window_bounds = array<i64: 16, 32>}, {pipeline_mode = #tpu.pipeline_mode<synchronous>, transform_indices = @transform_4, window_bounds = array<i64: 1, 32>}, {transform_indices = @transform_5, window_bounds = array<i64: 16, 32>}]} {
    %c0 = arith.constant 0 : index
    %c0_0 = arith.constant 0 : index
    %0 = vector.load %arg1[%c0, %c0_0] : memref<16x16xf32, #tpu.memory_space<vmem>>, vector<16x16xf32>
    %c0_1 = arith.constant 0 : index
    %c0_2 = arith.constant 0 : index
    %1 = vector.load %arg2[%c0_1, %c0_2] : memref<1x16xf32, #tpu.memory_space<vmem>>, vector<1x16xf32>
    %c0_3 = arith.constant 0 : index
    %c0_4 = arith.constant 0 : index
    %2 = vector.load %arg3[%c0_3, %c0_4] : memref<1x16xf32, #tpu.memory_space<vmem>>, vector<1x16xf32>
    %cst = arith.constant dense<0.000000e+00> : vector<16xf32>
    %3 = vector.multi_reduction <add>, %0, %cst [1] : vector<16x16xf32> to vector<16xf32>
    %4 = vector.shape_cast %3 : vector<16xf32> to vector<16x1xf32>
    %cst_5 = arith.constant 1.600000e+01 : f32
    %5 = vector.broadcast %cst_5 : f32 to vector<16x1xf32>
    %6 = arith.divf %4, %5 : vector<16x1xf32>
    %7 = vector.broadcast %6 : vector<16x1xf32> to vector<16x16xf32>
    %8 = arith.subf %0, %7 : vector<16x16xf32>
    %9 = arith.mulf %8, %8 : vector<16x16xf32>
    %cst_6 = arith.constant dense<0.000000e+00> : vector<16xf32>
    %10 = vector.multi_reduction <add>, %9, %cst_6 [1] : vector<16x16xf32> to vector<16xf32>
    %11 = vector.shape_cast %10 : vector<16xf32> to vector<16x1xf32>
    %cst_7 = arith.constant 1.600000e+01 : f32
    %12 = vector.broadcast %cst_7 : f32 to vector<16x1xf32>
    %13 = arith.divf %11, %12 : vector<16x1xf32>
    %cst_8 = arith.constant 9.99999974E-6 : f32
    %14 = vector.broadcast %cst_8 : f32 to vector<16x1xf32>
    %15 = arith.addf %13, %14 : vector<16x1xf32>
    %16 = math.rsqrt %15 : vector<16x1xf32>
    %17 = vector.broadcast %16 : vector<16x1xf32> to vector<16x16xf32>
    %18 = arith.mulf %8, %17 : vector<16x16xf32>
    %19 = vector.broadcast %1 : vector<1x16xf32> to vector<16x16xf32>
    %20 = arith.mulf %18, %19 : vector<16x16xf32>
    %21 = vector.broadcast %2 : vector<1x16xf32> to vector<16x16xf32>
    %22 = arith.addf %20, %21 : vector<16x16xf32>
    %c0_9 = arith.constant 0 : index
    %c0_10 = arith.constant 0 : index
    %23 = vector.load %arg4[%c0_9, %c0_10] : memref<16x32xf32, #tpu.memory_space<vmem>>, vector<16x32xf32>
    %cst_11 = arith.constant dense<0.000000e+00> : vector<16x32xf32>
    %24 = tpu.matmul %22, %23, %cst_11 {dimension_numbers = #tpu.dot_dimension_numbers<[1], [0], [0], [1], [0, 0, 1, 1], [], []>} : vector<16x16xf32>, vector<16x32xf32>, vector<16x32xf32> -> vector<16x32xf32>
    %c0_12 = arith.constant 0 : index
    %c0_13 = arith.constant 0 : index
    %25 = vector.load %arg5[%c0_12, %c0_13] : memref<1x32xf32, #tpu.memory_space<vmem>>, vector<1x32xf32>
    %26 = vector.broadcast %25 : vector<1x32xf32> to vector<16x32xf32>
    %27 = arith.addf %24, %26 : vector<16x32xf32>
    %c0_14 = arith.constant 0 : index
    %c0_15 = arith.constant 0 : index
    %28 = vector.load %arg6[%c0_14, %c0_15] : memref<16x32xf32, #tpu.memory_space<vmem>>, vector<16x32xf32>
    tpu.vector_store %arg6[%c0_14, %c0_15], %27 {strides = array<i32>} : memref<16x32xf32, #tpu.memory_space<vmem>>, vector<16x32xf32>,
    return
  }
  func.func @transform_0(%arg0: i32) -> (i32, i32) {
    %c0_i32 = arith.constant 0 : i32
    %c0_i32_0 = arith.constant 0 : i32
    return %arg0, %c0_i32 : i32, i32
  }
  func.func @transform_1(%arg0: i32) -> (i32, i32) {
    %c0_i32 = arith.constant 0 : i32
    %c0_i32_0 = arith.constant 0 : i32
    %c0_i32_1 = arith.constant 0 : i32
    return %c0_i32, %c0_i32_0 : i32, i32
  }
  func.func @transform_2(%arg0: i32) -> (i32, i32) {
    %c0_i32 = arith.constant 0 : i32
    %c0_i32_0 = arith.constant 0 : i32
    %c0_i32_1 = arith.constant 0 : i32
    return %c0_i32, %c0_i32_0 : i32, i32
  }
  func.func @transform_3(%arg0: i32) -> (i32, i32) {
    %c0_i32 = arith.constant 0 : i32
    %c0_i32_0 = arith.constant 0 : i32
    %c0_i32_1 = arith.constant 0 : i32
    return %c0_i32, %c0_i32_0 : i32, i32
  }
  func.func @transform_4(%arg0: i32) -> (i32, i32) {
    %c0_i32 = arith.constant 0 : i32
    %c0_i32_0 = arith.constant 0 : i32
    %c0_i32_1 = arith.constant 0 : i32
    return %c0_i32, %c0_i32_0 : i32, i32
  }
  func.func @transform_5(%arg0: i32) -> (i32, i32) {
    %c0_i32 = arith.constant 0 : i32
    %c0_i32_0 = arith.constant 0 : i32
    return %arg0, %c0_i32 : i32, i32
  }
}

module attributes {stable_mosaic.version = 11 : i64} {
  func.func @_ff_block_kernel(%arg0: i32, %arg1: memref<16x32xf32, #tpu.memory_space<vmem>>, %arg2: memref<1x32xf32, #tpu.memory_space<vmem>>, %arg3: memref<1x32xf32, #tpu.memory_space<vmem>>, %arg4: memref<32x256xf32, #tpu.memory_space<vmem>>, %arg5: memref<1x256xf32, #tpu.memory_space<vmem>>, %arg6: memref<128x32xf32, #tpu.memory_space<vmem>>, %arg7: memref<1x32xf32, #tpu.memory_space<vmem>>, %arg8: memref<16x32xf32, #tpu.memory_space<vmem>>) attributes {dimension_semantics = [#tpu.dimension_semantics<parallel>], iteration_bounds = array<i64: 1>, scalar_prefetch = 0 : i64, scratch_operands = 0 : i64, tpu.core_type = #tpu.core_type<tc>, window_params = [{transform_indices = @transform_0, window_bounds = array<i64: 16, 32>}, {pipeline_mode = #tpu.pipeline_mode<synchronous>, transform_indices = @transform_1, window_bounds = array<i64: 1, 32>}, {pipeline_mode = #tpu.pipeline_mode<synchronous>, transform_indices = @transform_2, window_bounds = array<i64: 1, 32>}, {pipeline_mode = #tpu.pipeline_mode<synchronous>, transform_indices = @transform_3, window_bounds = array<i64: 32, 256>}, {pipeline_mode = #tpu.pipeline_mode<synchronous>, transform_indices = @transform_4, window_bounds = array<i64: 1, 256>}, {pipeline_mode = #tpu.pipeline_mode<synchronous>, transform_indices = @transform_5, window_bounds = array<i64: 128, 32>}, {pipeline_mode = #tpu.pipeline_mode<synchronous>, transform_indices = @transform_6, window_bounds = array<i64: 1, 32>}, {transform_indices = @transform_7, window_bounds = array<i64: 16, 32>}]} {
    %c0 = arith.constant 0 : index
    %c0_0 = arith.constant 0 : index
    %0 = vector.load %arg1[%c0, %c0_0] : memref<16x32xf32, #tpu.memory_space<vmem>>, vector<16x32xf32>
    %c0_1 = arith.constant 0 : index
    %c0_2 = arith.constant 0 : index
    %1 = vector.load %arg2[%c0_1, %c0_2] : memref<1x32xf32, #tpu.memory_space<vmem>>, vector<1x32xf32>
    %c0_3 = arith.constant 0 : index
    %c0_4 = arith.constant 0 : index
    %2 = vector.load %arg3[%c0_3, %c0_4] : memref<1x32xf32, #tpu.memory_space<vmem>>, vector<1x32xf32>
    %cst = arith.constant dense<0.000000e+00> : vector<16xf32>
    %3 = vector.multi_reduction <add>, %0, %cst [1] : vector<16x32xf32> to vector<16xf32>
    %4 = vector.shape_cast %3 : vector<16xf32> to vector<16x1xf32>
    %cst_5 = arith.constant 3.200000e+01 : f32
    %5 = vector.broadcast %cst_5 : f32 to vector<16x1xf32>
    %6 = arith.divf %4, %5 : vector<16x1xf32>
    %7 = vector.broadcast %6 : vector<16x1xf32> to vector<16x32xf32>
    %8 = arith.subf %0, %7 : vector<16x32xf32>
    %9 = arith.mulf %8, %8 : vector<16x32xf32>
    %cst_6 = arith.constant dense<0.000000e+00> : vector<16xf32>
    %10 = vector.multi_reduction <add>, %9, %cst_6 [1] : vector<16x32xf32> to vector<16xf32>
    %11 = vector.shape_cast %10 : vector<16xf32> to vector<16x1xf32>
    %cst_7 = arith.constant 3.200000e+01 : f32
    %12 = vector.broadcast %cst_7 : f32 to vector<16x1xf32>
    %13 = arith.divf %11, %12 : vector<16x1xf32>
    %cst_8 = arith.constant 9.99999974E-6 : f32
    %14 = vector.broadcast %cst_8 : f32 to vector<16x1xf32>
    %15 = arith.addf %13, %14 : vector<16x1xf32>
    %16 = math.rsqrt %15 : vector<16x1xf32>
    %17 = vector.broadcast %16 : vector<16x1xf32> to vector<16x32xf32>
    %18 = arith.mulf %8, %17 : vector<16x32xf32>
    %19 = vector.broadcast %1 : vector<1x32xf32> to vector<16x32xf32>
    %20 = arith.mulf %18, %19 : vector<16x32xf32>
    %21 = vector.broadcast %2 : vector<1x32xf32> to vector<16x32xf32>
    %22 = arith.addf %20, %21 : vector<16x32xf32>
    %c0_9 = arith.constant 0 : index
    %c0_10 = arith.constant 0 : index
    %23 = vector.load %arg4[%c0_9, %c0_10] : memref<32x256xf32, #tpu.memory_space<vmem>>, vector<32x256xf32>
    %cst_11 = arith.constant dense<0.000000e+00> : vector<16x256xf32>
    %24 = tpu.matmul %22, %23, %cst_11 {dimension_numbers = #tpu.dot_dimension_numbers<[1], [0], [0], [1], [0, 0, 1, 1], [], []>} : vector<16x32xf32>, vector<32x256xf32>, vector<16x256xf32> -> vector<16x256xf32>
    %c0_12 = arith.constant 0 : index
    %c0_13 = arith.constant 0 : index
    %25 = vector.load %arg5[%c0_12, %c0_13] : memref<1x256xf32, #tpu.memory_space<vmem>>, vector<1x256xf32>
    %26 = vector.broadcast %25 : vector<1x256xf32> to vector<16x256xf32>
    %27 = arith.addf %24, %26 : vector<16x256xf32>
    %28 = vector.extract_strided_slice %27 {offsets = [0, 0], sizes = [16, 128], strides = [1, 1]} : vector<16x256xf32> to vector<16x128xf32>
    %29 = vector.extract_strided_slice %27 {offsets = [0, 128], sizes = [16, 128], strides = [1, 1]} : vector<16x256xf32> to vector<16x128xf32>
    %cst_14 = arith.constant 5.000000e-01 : f32
    %30 = vector.broadcast %cst_14 : f32 to vector<16x128xf32>
    %31 = arith.mulf %30, %29 : vector<16x128xf32>
    %cst_15 = arith.constant 0.707106769 : f32
    %32 = vector.broadcast %cst_15 : f32 to vector<16x128xf32>
    %33 = arith.mulf %29, %32 : vector<16x128xf32>
    %34 = math.erf %33 : vector<16x128xf32>
    %cst_16 = arith.constant 1.000000e+00 : f32
    %35 = vector.broadcast %cst_16 : f32 to vector<16x128xf32>
    %36 = arith.addf %35, %34 : vector<16x128xf32>
    %37 = arith.mulf %31, %36 : vector<16x128xf32>
    %38 = arith.mulf %28, %37 : vector<16x128xf32>
    %c0_17 = arith.constant 0 : index
    %c0_18 = arith.constant 0 : index
    %39 = vector.load %arg6[%c0_17, %c0_18] : memref<128x32xf32, #tpu.memory_space<vmem>>, vector<128x32xf32>
    %cst_19 = arith.constant dense<0.000000e+00> : vector<16x32xf32>
    %40 = tpu.matmul %38, %39, %cst_19 {dimension_numbers = #tpu.dot_dimension_numbers<[1], [0], [0], [1], [0, 0, 1, 1], [], []>} : vector<16x128xf32>, vector<128x32xf32>, vector<16x32xf32> -> vector<16x32xf32>
    %c0_20 = arith.constant 0 : index
    %c0_21 = arith.constant 0 : index
    %41 = vector.load %arg7[%c0_20, %c0_21] : memref<1x32xf32, #tpu.memory_space<vmem>>, vector<1x32xf32>
    %42 = vector.broadcast %41 : vector<1x32xf32> to vector<16x32xf32>
    %43 = arith.addf %40, %42 : vector<16x32xf32>
    %44 = arith.addf %43, %0 : vector<16x32xf32>
    %c0_22 = arith.constant 0 : index
    %c0_23 = arith.constant 0 : index
    %45 = vector.load %arg8[%c0_22, %c0_23] : memref<16x32xf32, #tpu.memory_space<vmem>>, vector<16x32xf32>
    tpu.vector_store %arg8[%c0_22, %c0_23], %44 {strides = array<i32>} : memref<16x32xf32, #tpu.memory_space<vmem>>, vector<16x32xf32>,
    return
  }
  func.func @transform_0(%arg0: i32) -> (i32, i32) {
    %c0_i32 = arith.constant 0 : i32
    %c0_i32_0 = arith.constant 0 : i32
    return %arg0, %c0_i32 : i32, i32
  }
  func.func @transform_1(%arg0: i32) -> (i32, i32) {
    %c0_i32 = arith.constant 0 : i32
    %c0_i32_0 = arith.constant 0 : i32
    %c0_i32_1 = arith.constant 0 : i32
    return %c0_i32, %c0_i32_0 : i32, i32
  }
  func.func @transform_2(%arg0: i32) -> (i32, i32) {
    %c0_i32 = arith.constant 0 : i32
    %c0_i32_0 = arith.constant 0 : i32
    %c0_i32_1 = arith.constant 0 : i32
    return %c0_i32, %c0_i32_0 : i32, i32
  }
  func.func @transform_3(%arg0: i32) -> (i32, i32) {
    %c0_i32 = arith.constant 0 : i32
    %c0_i32_0 = arith.constant 0 : i32
    %c0_i32_1 = arith.constant 0 : i32
    return %c0_i32, %c0_i32_0 : i32, i32
  }
  func.func @transform_4(%arg0: i32) -> (i32, i32) {
    %c0_i32 = arith.constant 0 : i32
    %c0_i32_0 = arith.constant 0 : i32
    %c0_i32_1 = arith.constant 0 : i32
    return %c0_i32, %c0_i32_0 : i32, i32
  }
  func.func @transform_5(%arg0: i32) -> (i32, i32) {
    %c0_i32 = arith.constant 0 : i32
    %c0_i32_0 = arith.constant 0 : i32
    %c0_i32_1 = arith.constant 0 : i32
    return %c0_i32, %c0_i32_0 : i32, i32
  }
  func.func @transform_6(%arg0: i32) -> (i32, i32) {
    %c0_i32 = arith.constant 0 : i32
    %c0_i32_0 = arith.constant 0 : i32
    %c0_i32_1 = arith.constant 0 : i32
    return %c0_i32, %c0_i32_0 : i32, i32
  }
  func.func @transform_7(%arg0: i32) -> (i32, i32) {
    %c0_i32 = arith.constant 0 : i32
    %c0_i32_0 = arith.constant 0 : i32
    return %arg0, %c0_i32 : i32, i32
  }
}

module attributes {stable_mosaic.version = 11 : i64} {
  func.func @_attn_block_kernel(%arg0: i32, %arg1: memref<1x8x32xf32, #tpu.memory_space<vmem>>, %arg2: memref<1x32xf32, #tpu.memory_space<vmem>>, %arg3: memref<1x32xf32, #tpu.memory_space<vmem>>, %arg4: memref<32x32xf32, #tpu.memory_space<vmem>>, %arg5: memref<32x32xf32, #tpu.memory_space<vmem>>, %arg6: memref<32x32xf32, #tpu.memory_space<vmem>>, %arg7: memref<32x32xf32, #tpu.memory_space<vmem>>, %arg8: memref<1x32xf32, #tpu.memory_space<vmem>>, %arg9: memref<1x8x32xf32, #tpu.memory_space<vmem>>) attributes {dimension_semantics = [#tpu.dimension_semantics<parallel>], iteration_bounds = array<i64: 2>, scalar_prefetch = 0 : i64, scratch_operands = 0 : i64, tpu.core_type = #tpu.core_type<tc>, window_params = [{transform_indices = @transform_0, window_bounds = array<i64: 1, 8, 32>}, {pipeline_mode = #tpu.pipeline_mode<synchronous>, transform_indices = @transform_1, window_bounds = array<i64: 1, 32>}, {pipeline_mode = #tpu.pipeline_mode<synchronous>, transform_indices = @transform_2, window_bounds = array<i64: 1, 32>}, {pipeline_mode = #tpu.pipeline_mode<synchronous>, transform_indices = @transform_3, window_bounds = array<i64: 32, 32>}, {pipeline_mode = #tpu.pipeline_mode<synchronous>, transform_indices = @transform_4, window_bounds = array<i64: 32, 32>}, {pipeline_mode = #tpu.pipeline_mode<synchronous>, transform_indices = @transform_5, window_bounds = array<i64: 32, 32>}, {pipeline_mode = #tpu.pipeline_mode<synchronous>, transform_indices = @transform_6, window_bounds = array<i64: 32, 32>}, {pipeline_mode = #tpu.pipeline_mode<synchronous>, transform_indices = @transform_7, window_bounds = array<i64: 1, 32>}, {transform_indices = @transform_8, window_bounds = array<i64: 1, 8, 32>}]} {
    %c0 = arith.constant 0 : index
    %c0_0 = arith.constant 0 : index
    %c0_1 = arith.constant 0 : index
    %0 = vector.load %arg1[%c0, %c0_0, %c0_1] : memref<1x8x32xf32, #tpu.memory_space<vmem>>, vector<1x8x32xf32>
    %1 = vector.shape_cast %0 : vector<1x8x32xf32> to vector<8x32xf32>
    %c0_2 = arith.constant 0 : index
    %c0_3 = arith.constant 0 : index
    %2 = vector.load %arg2[%c0_2, %c0_3] : memref<1x32xf32, #tpu.memory_space<vmem>>, vector<1x32xf32>
    %c0_4 = arith.constant 0 : index
    %c0_5 = arith.constant 0 : index
    %3 = vector.load %arg3[%c0_4, %c0_5] : memref<1x32xf32, #tpu.memory_space<vmem>>, vector<1x32xf32>
    %cst = arith.constant dense<0.000000e+00> : vector<8xf32>
    %4 = vector.multi_reduction <add>, %1, %cst [1] : vector<8x32xf32> to vector<8xf32>
    %5 = vector.shape_cast %4 : vector<8xf32> to vector<8x1xf32>
    %cst_6 = arith.constant 3.200000e+01 : f32
    %6 = vector.broadcast %cst_6 : f32 to vector<8x1xf32>
    %7 = arith.divf %5, %6 : vector<8x1xf32>
    %8 = vector.broadcast %7 : vector<8x1xf32> to vector<8x32xf32>
    %9 = arith.subf %1, %8 : vector<8x32xf32>
    %10 = arith.mulf %9, %9 : vector<8x32xf32>
    %cst_7 = arith.constant dense<0.000000e+00> : vector<8xf32>
    %11 = vector.multi_reduction <add>, %10, %cst_7 [1] : vector<8x32xf32> to vector<8xf32>
    %12 = vector.shape_cast %11 : vector<8xf32> to vector<8x1xf32>
    %cst_8 = arith.constant 3.200000e+01 : f32
    %13 = vector.broadcast %cst_8 : f32 to vector<8x1xf32>
    %14 = arith.divf %12, %13 : vector<8x1xf32>
    %cst_9 = arith.constant 9.99999974E-6 : f32
    %15 = vector.broadcast %cst_9 : f32 to vector<8x1xf32>
    %16 = arith.addf %14, %15 : vector<8x1xf32>
    %17 = math.rsqrt %16 : vector<8x1xf32>
    %18 = vector.broadcast %17 : vector<8x1xf32> to vector<8x32xf32>
    %19 = arith.mulf %9, %18 : vector<8x32xf32>
    %20 = vector.broadcast %2 : vector<1x32xf32> to vector<8x32xf32>
    %21 = arith.mulf %19, %20 : vector<8x32xf32>
    %22 = vector.broadcast %3 : vector<1x32xf32> to vector<8x32xf32>
    %23 = arith.addf %21, %22 : vector<8x32xf32>
    %c0_10 = arith.constant 0 : index
    %c0_11 = arith.constant 0 : index
    %24 = vector.load %arg4[%c0_10, %c0_11] : memref<32x32xf32, #tpu.memory_space<vmem>>, vector<32x32xf32>
    %cst_12 = arith.constant dense<0.000000e+00> : vector<8x32xf32>
    %25 = tpu.matmul %23, %24, %cst_12 {dimension_numbers = #tpu.dot_dimension_numbers<[1], [0], [0], [1], [0, 0, 1, 1], [], []>} : vector<8x32xf32>, vector<32x32xf32>, vector<8x32xf32> -> vector<8x32xf32>
    %cst_13 = arith.constant 2.500000e-01 : f32
    %26 = vector.broadcast %cst_13 : f32 to vector<8x32xf32>
    %27 = arith.mulf %25, %26 : vector<8x32xf32>
    %c0_14 = arith.constant 0 : index
    %c0_15 = arith.constant 0 : index
    %28 = vector.load %arg5[%c0_14, %c0_15] : memref<32x32xf32, #tpu.memory_space<vmem>>, vector<32x32xf32>
    %cst_16 = arith.constant dense<0.000000e+00> : vector<8x32xf32>
    %29 = tpu.matmul %23, %28, %cst_16 {dimension_numbers = #tpu.dot_dimension_numbers<[1], [0], [0], [1], [0, 0, 1, 1], [], []>} : vector<8x32xf32>, vector<32x32xf32>, vector<8x32xf32> -> vector<8x32xf32>
    %c0_17 = arith.constant 0 : index
    %c0_18 = arith.constant 0 : index
    %30 = vector.load %arg6[%c0_17, %c0_18] : memref<32x32xf32, #tpu.memory_space<vmem>>, vector<32x32xf32>
    %cst_19 = arith.constant dense<0.000000e+00> : vector<8x32xf32>
    %31 = tpu.matmul %23, %30, %cst_19 {dimension_numbers = #tpu.dot_dimension_numbers<[1], [0], [0], [1], [0, 0, 1, 1], [], []>} : vector<8x32xf32>, vector<32x32xf32>, vector<8x32xf32> -> vector<8x32xf32>
    %c0_20 = arith.constant 0 : index
    %c0_21 = arith.constant 0 : index
    %32 = vector.load %arg7[%c0_20, %c0_21] : memref<32x32xf32, #tpu.memory_space<vmem>>, vector<32x32xf32>
    %cst_22 = arith.constant 0.000000e+00 : f32
    %33 = vector.broadcast %cst_22 : f32 to vector<8x32xf32>
    %34 = vector.extract_strided_slice %27 {offsets = [0, 0], sizes = [8, 16], strides = [1, 1]} : vector<8x32xf32> to vector<8x16xf32>
    %35 = vector.extract_strided_slice %29 {offsets = [0, 0], sizes = [8, 16], strides = [1, 1]} : vector<8x32xf32> to vector<8x16xf32>
    %36 = vector.extract_strided_slice %31 {offsets = [0, 0], sizes = [8, 16], strides = [1, 1]} : vector<8x32xf32> to vector<8x16xf32>
    %cst_23 = arith.constant dense<0.000000e+00> : vector<8x8xf32>
    %37 = tpu.matmul %34, %35, %cst_23 {dimension_numbers = #tpu.dot_dimension_numbers<[1], [1], [0], [0], [0, 0, 1, 0], [], []>} : vector<8x16xf32>, vector<8x16xf32>, vector<8x8xf32> -> vector<8x8xf32>
    %cst_24 = arith.constant dense<0xFF800000> : vector<8xf32>
    %38 = vector.multi_reduction <maximumf>, %37, %cst_24 [1] : vector<8x8xf32> to vector<8xf32>
    %39 = vector.shape_cast %38 : vector<8xf32> to vector<8x1xf32>
    %40 = vector.broadcast %39 : vector<8x1xf32> to vector<8x8xf32>
    %41 = arith.subf %37, %40 : vector<8x8xf32>
    %42 = math.exp %41 : vector<8x8xf32>
    %cst_25 = arith.constant dense<0.000000e+00> : vector<8xf32>
    %43 = vector.multi_reduction <add>, %42, %cst_25 [1] : vector<8x8xf32> to vector<8xf32>
    %44 = vector.shape_cast %43 : vector<8xf32> to vector<8x1xf32>
    %45 = vector.broadcast %44 : vector<8x1xf32> to vector<8x8xf32>
    %46 = arith.divf %42, %45 : vector<8x8xf32>
    %cst_26 = arith.constant dense<0.000000e+00> : vector<8x16xf32>
    %47 = tpu.matmul %46, %36, %cst_26 {dimension_numbers = #tpu.dot_dimension_numbers<[1], [0], [0], [1], [0, 0, 1, 1], [], []>} : vector<8x8xf32>, vector<8x16xf32>, vector<8x16xf32> -> vector<8x16xf32>
    %48 = vector.extract_strided_slice %32 {offsets = [0, 0], sizes = [16, 32], strides = [1, 1]} : vector<32x32xf32> to vector<16x32xf32>
    %cst_27 = arith.constant dense<0.000000e+00> : vector<8x32xf32>
    %49 = tpu.matmul %47, %48, %cst_27 {dimension_numbers = #tpu.dot_dimension_numbers<[1], [0], [0], [1], [0, 0, 1, 1], [], []>} : vector<8x16xf32>, vector<16x32xf32>, vector<8x32xf32> -> vector<8x32xf32>
    %50 = arith.addf %33, %49 : vector<8x32xf32>
    %51 = vector.extract_strided_slice %27 {offsets = [0, 16], sizes = [8, 16], strides = [1, 1]} : vector<8x32xf32> to vector<8x16xf32>
    %52 = vector.extract_strided_slice %29 {offsets = [0, 16], sizes = [8, 16], strides = [1, 1]} : vector<8x32xf32> to vector<8x16xf32>
    %53 = vector.extract_strided_slice %31 {offsets = [0, 16], sizes = [8, 16], strides = [1, 1]} : vector<8x32xf32> to vector<8x16xf32>
    %cst_28 = arith.constant dense<0.000000e+00> : vector<8x8xf32>
    %54 = tpu.matmul %51, %52, %cst_28 {dimension_numbers = #tpu.dot_dimension_numbers<[1], [1], [0], [0], [0, 0, 1, 0], [], []>} : vector<8x16xf32>, vector<8x16xf32>, vector<8x8xf32> -> vector<8x8xf32>
    %cst_29 = arith.constant dense<0xFF800000> : vector<8xf32>
    %55 = vector.multi_reduction <maximumf>, %54, %cst_29 [1] : vector<8x8xf32> to vector<8xf32>
    %56 = vector.shape_cast %55 : vector<8xf32> to vector<8x1xf32>
    %57 = vector.broadcast %56 : vector<8x1xf32> to vector<8x8xf32>
    %58 = arith.subf %54, %57 : vector<8x8xf32>
    %59 = math.exp %58 : vector<8x8xf32>
    %cst_30 = arith.constant dense<0.000000e+00> : vector<8xf32>
    %60 = vector.multi_reduction <add>, %59, %cst_30 [1] : vector<8x8xf32> to vector<8xf32>
    %61 = vector.shape_cast %60 : vector<8xf32> to vector<8x1xf32>
    %62 = vector.broadcast %61 : vector<8x1xf32> to vector<8x8xf32>
    %63 = arith.divf %59, %62 : vector<8x8xf32>
    %cst_31 = arith.constant dense<0.000000e+00> : vector<8x16xf32>
    %64 = tpu.matmul %63, %53, %cst_31 {dimension_numbers = #tpu.dot_dimension_numbers<[1], [0], [0], [1], [0, 0, 1, 1], [], []>} : vector<8x8xf32>, vector<8x16xf32>, vector<8x16xf32> -> vector<8x16xf32>
    %65 = vector.extract_strided_slice %32 {offsets = [16, 0], sizes = [16, 32], strides = [1, 1]} : vector<32x32xf32> to vector<16x32xf32>
    %cst_32 = arith.constant dense<0.000000e+00> : vector<8x32xf32>
    %66 = tpu.matmul %64, %65, %cst_32 {dimension_numbers = #tpu.dot_dimension_numbers<[1], [0], [0], [1], [0, 0, 1, 1], [], []>} : vector<8x16xf32>, vector<16x32xf32>, vector<8x32xf32> -> vector<8x32xf32>
    %67 = arith.addf %50, %66 : vector<8x32xf32>
    %c0_33 = arith.constant 0 : index
    %c0_34 = arith.constant 0 : index
    %68 = vector.load %arg8[%c0_33, %c0_34] : memref<1x32xf32, #tpu.memory_space<vmem>>, vector<1x32xf32>
    %69 = vector.broadcast %68 : vector<1x32xf32> to vector<8x32xf32>
    %70 = arith.addf %67, %69 : vector<8x32xf32>
    %71 = arith.addf %70, %1 : vector<8x32xf32>
    %c0_35 = arith.constant 0 : index
    %c0_36 = arith.constant 0 : index
    %c0_37 = arith.constant 0 : index
    %72 = vector.load %arg9[%c0_35, %c0_36, %c0_37] : memref<1x8x32xf32, #tpu.memory_space<vmem>>, vector<1x8x32xf32>
    %73 = vector.shape_cast %72 : vector<1x8x32xf32> to vector<8x32xf32>
    %74 = vector.shape_cast %71 : vector<8x32xf32> to vector<1x8x32xf32>
    tpu.vector_store %arg9[%c0_35, %c0_36, %c0_37], %74 {strides = array<i32>} : memref<1x8x32xf32, #tpu.memory_space<vmem>>, vector<1x8x32xf32>,
    return
  }
  func.func @transform_0(%arg0: i32) -> (i32, i32, i32) {
    %c0_i32 = arith.constant 0 : i32
    %c0_i32_0 = arith.constant 0 : i32
    %c0_i32_1 = arith.constant 0 : i32
    return %arg0, %c0_i32, %c0_i32_0 : i32, i32, i32
  }
  func.func @transform_1(%arg0: i32) -> (i32, i32) {
    %c0_i32 = arith.constant 0 : i32
    %c0_i32_0 = arith.constant 0 : i32
    %c0_i32_1 = arith.constant 0 : i32
    return %c0_i32, %c0_i32_0 : i32, i32
  }
  func.func @transform_2(%arg0: i32) -> (i32, i32) {
    %c0_i32 = arith.constant 0 : i32
    %c0_i32_0 = arith.constant 0 : i32
    %c0_i32_1 = arith.constant 0 : i32
    return %c0_i32, %c0_i32_0 : i32, i32
  }
  func.func @transform_3(%arg0: i32) -> (i32, i32) {
    %c0_i32 = arith.constant 0 : i32
    %c0_i32_0 = arith.constant 0 : i32
    %c0_i32_1 = arith.constant 0 : i32
    return %c0_i32, %c0_i32_0 : i32, i32
  }
  func.func @transform_4(%arg0: i32) -> (i32, i32) {
    %c0_i32 = arith.constant 0 : i32
    %c0_i32_0 = arith.constant 0 : i32
    %c0_i32_1 = arith.constant 0 : i32
    return %c0_i32, %c0_i32_0 : i32, i32
  }
  func.func @transform_5(%arg0: i32) -> (i32, i32) {
    %c0_i32 = arith.constant 0 : i32
    %c0_i32_0 = arith.constant 0 : i32
    %c0_i32_1 = arith.constant 0 : i32
    return %c0_i32, %c0_i32_0 : i32, i32
  }
  func.func @transform_6(%arg0: i32) -> (i32, i32) {
    %c0_i32 = arith.constant 0 : i32
    %c0_i32_0 = arith.constant 0 : i32
    %c0_i32_1 = arith.constant 0 : i32
    return %c0_i32, %c0_i32_0 : i32, i32
  }
  func.func @transform_7(%arg0: i32) -> (i32, i32) {
    %c0_i32 = arith.constant 0 : i32
    %c0_i32_0 = arith.constant 0 : i32
    %c0_i32_1 = arith.constant 0 : i32
    return %c0_i32, %c0_i32_0 : i32, i32
  }
  func.func @transform_8(%arg0: i32) -> (i32, i32, i32) {
    %c0_i32 = arith.constant 0 : i32
    %c0_i32_0 = arith.constant 0 : i32
    %c0_i32_1 = arith.constant 0 : i32
    return %arg0, %c0_i32, %c0_i32_0 : i32, i32, i32
  }
}

module attributes {stable_mosaic.version = 11 : i64} {
  func.func @_linear_kernel(%arg0: i32, %arg1: memref<16x32xf32, #tpu.memory_space<vmem>>, %arg2: memref<32x16xf32, #tpu.memory_space<vmem>>, %arg3: memref<1x16xf32, #tpu.memory_space<vmem>>, %arg4: memref<16x16xf32, #tpu.memory_space<vmem>>) attributes {dimension_semantics = [#tpu.dimension_semantics<parallel>], iteration_bounds = array<i64: 1>, scalar_prefetch = 0 : i64, scratch_operands = 0 : i64, tpu.core_type = #tpu.core_type<tc>, window_params = [{transform_indices = @transform_0, window_bounds = array<i64: 16, 32>}, {pipeline_mode = #tpu.pipeline_mode<synchronous>, transform_indices = @transform_1, window_bounds = array<i64: 32, 16>}, {pipeline_mode = #tpu.pipeline_mode<synchronous>, transform_indices = @transform_2, window_bounds = array<i64: 1, 16>}, {transform_indices = @transform_3, window_bounds = array<i64: 16, 16>}]} {
    %c0 = arith.constant 0 : index
    %c0_0 = arith.constant 0 : index
    %0 = vector.load %arg1[%c0, %c0_0] : memref<16x32xf32, #tpu.memory_space<vmem>>, vector<16x32xf32>
    %c0_1 = arith.constant 0 : index
    %c0_2 = arith.constant 0 : index
    %1 = vector.load %arg2[%c0_1, %c0_2] : memref<32x16xf32, #tpu.memory_space<vmem>>, vector<32x16xf32>
    %cst = arith.constant dense<0.000000e+00> : vector<16x16xf32>
    %2 = tpu.matmul %0, %1, %cst {dimension_numbers = #tpu.dot_dimension_numbers<[1], [0], [0], [1], [0, 0, 1, 1], [], []>} : vector<16x32xf32>, vector<32x16xf32>, vector<16x16xf32> -> vector<16x16xf32>
    %c0_3 = arith.constant 0 : index
    %c0_4 = arith.constant 0 : index
    %3 = vector.load %arg3[%c0_3, %c0_4] : memref<1x16xf32, #tpu.memory_space<vmem>>, vector<1x16xf32>
    %4 = vector.broadcast %3 : vector<1x16xf32> to vector<16x16xf32>
    %5 = arith.addf %2, %4 : vector<16x16xf32>
    %c0_5 = arith.constant 0 : index
    %c0_6 = arith.constant 0 : index
    %6 = vector.load %arg4[%c0_5, %c0_6] : memref<16x16xf32, #tpu.memory_space<vmem>>, vector<16x16xf32>
    tpu.vector_store %arg4[%c0_5, %c0_6], %5 {strides = array<i32>} : memref<16x16xf32, #tpu.memory_space<vmem>>, vector<16x16xf32>,
    return
  }
  func.func @transform_0(%arg0: i32) -> (i32, i32) {
    %c0_i32 = arith.constant 0 : i32
    %c0_i32_0 = arith.constant 0 : i32
    return %arg0, %c0_i32 : i32, i32
  }
  func.func @transform_1(%arg0: i32) -> (i32, i32) {
    %c0_i32 = arith.constant 0 : i32
    %c0_i32_0 = arith.constant 0 : i32
    %c0_i32_1 = arith.constant 0 : i32
    return %c0_i32, %c0_i32_0 : i32, i32
  }
  func.func @transform_2(%arg0: i32) -> (i32, i32) {
    %c0_i32 = arith.constant 0 : i32
    %c0_i32_0 = arith.constant 0 : i32
    %c0_i32_1 = arith.constant 0 : i32
    return %c0_i32, %c0_i32_0 : i32, i32
  }
  func.func @transform_3(%arg0: i32) -> (i32, i32) {
    %c0_i32 = arith.constant 0 : i32
    %c0_i32_0 = arith.constant 0 : i32
    return %arg0, %c0_i32 : i32, i32
  }
}

</mosaic_0001>

<llo_original>
// kernel: retrieval_patch_transformer.5
$region0: #{retrieval_patch_transformer.5}
  #allocation0 [shape = 'u32[]', space=smem, size = 0x4, offset = 0x4, fixed_abs, tag = 'smem constant byte address 0x4 - core index']
  #allocation1 [shape = 'u32[144,128]{1,0:T(1,128)}', space=vmem, size = 0x12000, scoped, tag = 'internal scratch']
  %s0 = inlined_call_operand.vmem [shape: f32[16,16], index: 0, kind: input, shape index: {}]
  %s1 = inlined_call_operand.vmem [shape: f32[1,16], index: 1, kind: input, shape index: {}]
  %s2 = inlined_call_operand.vmem [shape: f32[1,16], index: 2, kind: input, shape index: {}]
  %s3 = inlined_call_operand.vmem [shape: f32[16,32], index: 3, kind: input, shape index: {}]
  %s4 = inlined_call_operand.vmem [shape: f32[1,32], index: 4, kind: input, shape index: {}]
  %s5 = inlined_call_operand.vmem [shape: f32[16,32], index: 5, kind: output, shape index: {}]
  %s6 = sld [smem:[#allocation0]]
  $region30: #{retrieval_patch_transformer.5} parent=0
    _
  %s8 = ssub.s32 1, %s6
  %s9 = scalar_select 0, %s8, %s6
  // Predicated region
  $region2: #{retrieval_patch_transformer.5} parent=0 // pred_check
    _
  $region3: #{retrieval_patch_transformer.5} parent=0 // pred_check_branch
    %11 = sbr.rel (0) target = $region5
  $region4: #{retrieval_patch_transformer.5} parent=0 // pred_region
    _
  $region5: #{retrieval_patch_transformer.5} parent=0 // pred_fallthru
    _
  // Predicated region
  $region6: #{retrieval_patch_transformer.5} parent=0 // pred_check
    _
  $region7: #{retrieval_patch_transformer.5} parent=0 // pred_check_branch
    %13 = sbr.rel (0) target = $region9
  $region8: #{retrieval_patch_transformer.5} parent=0 // pred_region
    _
  $region9: #{retrieval_patch_transformer.5} parent=0 // pred_fallthru
    _
  // Predicated region
  $region10: #{retrieval_patch_transformer.5} parent=0 // pred_check
    _
  $region11: #{retrieval_patch_transformer.5} parent=0 // pred_check_branch
    %15 = sbr.rel (0) target = $region13
  $region12: #{retrieval_patch_transformer.5} parent=0 // pred_region
    _
  $region13: #{retrieval_patch_transformer.5} parent=0 // pred_fallthru
    _
  // Predicated region
  $region14: #{retrieval_patch_transformer.5} parent=0 // pred_check
    _
  $region15: #{retrieval_patch_transformer.5} parent=0 // pred_check_branch
    %17 = sbr.rel (0) target = $region17
  $region16: #{retrieval_patch_transformer.5} parent=0 // pred_region
    _
  $region17: #{retrieval_patch_transformer.5} parent=0 // pred_fallthru
    _
  // Predicated region
  $region18: #{retrieval_patch_transformer.5} parent=0 // pred_check
    _
  $region19: #{retrieval_patch_transformer.5} parent=0 // pred_check_branch
    %19 = sbr.rel (0) target = $region21
  $region20: #{retrieval_patch_transformer.5} parent=0 // pred_region
    _
  $region21: #{retrieval_patch_transformer.5} parent=0 // pred_fallthru
    _
  %v20 = vld [vmem:[%s0] sm:$0xff]
  %v21 = vld [vmem:[%s0 + $0x8] sm:$0xff]
  %v22 = vld [vmem:[%s1] sm:$0x1]
  %v23 = vld [vmem:[%s2] sm:$0x1]
  %vm24 = vcmask 130048
  %v25 = vsel %vm24, %v20, 0.0
  %26 = vadd.xlane.f32.xlu0 %v25
  %v27 = vpop.xlane.xlu0 %26
  %v28 = vsel %vm24, %v21, 0.0
  %29 = vadd.xlane.f32.xlu0 %v28
  %v30 = vpop.xlane.xlu0 %29
  %v31 = vrcp.pop 16.0
  %v32 = vmul.f32 %v27, %v31
  %v33 = vmul.f32 %v30, %v31
  %v34 = vsub.f32 %v20, %v32
  %v35 = vsub.f32 %v21, %v33
  %v36 = vmul.f32 %v34, %v34
  %v37 = vmul.f32 %v35, %v35
  %v38 = vsel %vm24, %v36, 0.0
  %39 = vadd.xlane.f32.xlu0 %v38
  %v40 = vpop.xlane.xlu0 %39
  %v41 = vsel %vm24, %v37, 0.0
  %42 = vadd.xlane.f32.xlu0 %v41
  %v43 = vpop.xlane.xlu0 %42
  %v44 = vmul.f32 %v40, %v31
  %v45 = vmul.f32 %v43, %v31
  %v46 = vadd.f32 %v44, 1e-05
  %v47 = vadd.f32 %v45, 1e-05
  %v48 = vrsqrt.pop %v46
  %v49 = vrsqrt.pop %v47
  %v50 = vmul.f32 %v34, %v48
  %v51 = vmul.f32 %v35, %v49
  %v53 = vlaneseq
  %v54 = vshrl.u32 %v53, 7
  %v55 = vsub.s32 0, %v54
  %v56 = vrot.slane %v22, %v55
  %v58 = vmul.f32 %v50, %v56
  %v59 = vmul.f32 %v51, %v56
  %v61 = vlaneseq
  %v62 = vshrl.u32 %v61, 7
  %v63 = vsub.s32 0, %v62
  %v64 = vrot.slane %v23, %v63
  %v66 = vadd.f32 %v58, %v64
  %v67 = vadd.f32 %v59, %v64
  %v68 = vld [vmem:[%s3] sm:$0xff]
  %v69 = vld [vmem:[%s3 + $0x8] sm:$0xff]
  %v70 = vld [vmem:[%s4] sm:$0x1]
  %v72 = vlaneseq
  %v73 = vshrl.u32 %v72, 7
  %v74 = vsub.s32 0, %v73
  %v75 = vrot.slane %v70, %v74
  %v78 = vsel %vm24, %v66, 0
  %v81 = vsel %vm24, %v67, 0
  %83 = vmatprep.subr.mxu0 0.0
  %84 = vmatpush1.msra.mxu0 0.0
  %85 = vmatprep.subr.mxu0 0.0
  %86 = vmatpush1.msra.mxu0 0.0
  %87 = vmatprep.subr.mxu0 0.0
  %88 = vmatpush1.msra.mxu0 0.0
  %89 = vmatprep.subr.mxu0 0.0
  %90 = vmatpush1.msra.mxu0 0.0
  %91 = vmatprep.subr.mxu0 0.0
  %92 = vmatpush1.msra.mxu0 0.0
  %93 = vmatprep.subr.mxu0 0.0
  %94 = vmatpush1.msra.mxu0 0.0
  %95 = vmatprep.subr.mxu0 0.0
  %96 = vmatpush1.msra.mxu0 0.0
  %97 = vmatprep.subr.mxu0 0.0
  %98 = vmatpush1.msra.mxu0 0.0
  %99 = vmatprep.subr.mxu0 0.0
  %100 = vmatpush1.msra.mxu0 0.0
  %101 = vmatprep.subr.mxu0 0.0
  %102 = vmatpush1.msra.mxu0 0.0
  %103 = vmatprep.subr.mxu0 0.0
  %104 = vmatpush1.msra.mxu0 0.0
  %105 = vmatprep.subr.mxu0 0.0
  %106 = vmatpush1.msra.mxu0 0.0
  %107 = vmatprep.subr.mxu0 0.0
  %108 = vmatpush1.msra.mxu0 0.0
  %109 = vmatprep.subr.mxu0 0.0
  %110 = vmatpush1.msra.mxu0 0.0
  %111 = vmatprep.subr.mxu0 0.0
  %112 = vmatpush1.msra.mxu0 %v69
  %113 = vmatprep.subr.mxu0 0.0
  %114 = vmatpush1.msra.mxu0 %v68
  %115 = vmatprep.subr.mxu0 0.0
  %116 = vmatpush2.msra.mxu0 0.0
  %117 = vmatprep.subr.mxu0 0.0
  %118 = vmatpush2.msra.mxu0 0.0
  %119 = vmatprep.subr.mxu0 0.0
  %120 = vmatpush2.msra.mxu0 0.0
  %121 = vmatprep.subr.mxu0 0.0
  %122 = vmatpush2.msra.mxu0 0.0
  %123 = vmatprep.subr.mxu0 0.0
  %124 = vmatpush2.msra.mxu0 0.0
  %125 = vmatprep.subr.mxu0 0.0
  %126 = vmatpush2.msra.mxu0 0.0
  %127 = vmatprep.subr.mxu0 0.0
  %128 = vmatpush2.msra.mxu0 0.0
  %129 = vmatprep.subr.mxu0 0.0
  %130 = vmatpush2.msra.mxu0 0.0
  %131 = vmatprep.subr.mxu0 0.0
  %132 = vmatpush2.msra.mxu0 0.0
  %133 = vmatprep.subr.mxu0 0.0
  %134 = vmatpush2.msra.mxu0 0.0
  %135 = vmatprep.subr.mxu0 0.0
  %136 = vmatpush2.msra.mxu0 0.0
  %137 = vmatprep.subr.mxu0 0.0
  %138 = vmatpush2.msra.mxu0 0.0
  %139 = vmatprep.subr.mxu0 0.0
  %140 = vmatpush2.msra.mxu0 0.0
  %141 = vmatprep.subr.mxu0 0.0
  %142 = vmatpush2.msra.mxu0 0.0
  %143 = vmatprep.subr.mxu0 0.0
  %144 = vmatpush2.msra.mxu0 0.0
  %145 = vmatprep.subr.mxu0 0.0
  %146 = vmatpush2.msra.mxu0 0.0
  %147 = vmatprep.mubr.f32.mxu0 0.0
  %148 = vmatmul.mubr.f32.gmra.mxu0 %v78
  %v149 = vpop.f32.mrf.mxu0
  %v150 = vadd.f32 %v75, %v149
  %v151 = vpop.f32.mrf.mxu0
  %152 = vmatprep.mubr.f32.mxu0 0.0
  %153 = vmatmul.mubr.f32.gmra.mxu0 %v81
  %v154 = vpop.f32.mrf.mxu0
  %v155 = vadd.f32 %v75, %v154
  %v156 = vpop.f32.mrf.mxu0
  %157 = vdwg.mxu0
  %vm158 = vcmask 261120
  %159 = vst.msk [vmem:[%s5] sm:$0xff] %vm158, %v150
  %160 = vst.msk [vmem:[%s5 + $0x8] sm:$0xff] %vm158, %v155
  // Predicated region
  $region22: #{retrieval_patch_transformer.5} parent=0 // pred_check
    _
  $region23: #{retrieval_patch_transformer.5} parent=0 // pred_check_branch
    %162 = sbr.rel (0) target = $region25
  $region24: #{retrieval_patch_transformer.5} parent=0 // pred_region
    _
  $region25: #{retrieval_patch_transformer.5} parent=0 // pred_fallthru
    _
  // Predicated region
  $region26: #{retrieval_patch_transformer.5} parent=0 // pred_check
    _
  $region27: #{retrieval_patch_transformer.5} parent=0 // pred_check_branch
    %164 = sbr.rel (0) target = $region29
  $region28: #{retrieval_patch_transformer.5} parent=0 // pred_region
    _
  $region29: #{retrieval_patch_transformer.5} parent=0 // pred_fallthru
    _

// kernel: retrieval_patch_transformer.8
$region0: #{retrieval_patch_transformer.8}
  #allocation0 [shape = 'u32[]', space=smem, size = 0x4, offset = 0x4, fixed_abs, tag = 'smem constant byte address 0x4 - core index']
  #allocation1 [shape = 'u32[144,128]{1,0:T(1,128)}', space=vmem, size = 0x12000, scoped, tag = 'internal scratch']
  %s0 = inlined_call_operand.vmem [shape: f32[16,32], index: 0, kind: input, shape index: {}]
  %s1 = inlined_call_operand.vmem [shape: f32[1,32], index: 1, kind: input, shape index: {}]
  %s2 = inlined_call_operand.vmem [shape: f32[1,32], index: 2, kind: input, shape index: {}]
  %s3 = inlined_call_operand.vmem [shape: f32[32,256], index: 3, kind: input, shape index: {}]
  %s4 = inlined_call_operand.vmem [shape: f32[1,256], index: 4, kind: input, shape index: {}]
  %s5 = inlined_call_operand.vmem [shape: f32[128,32], index: 5, kind: input, shape index: {}]
  %s6 = inlined_call_operand.vmem [shape: f32[1,32], index: 6, kind: input, shape index: {}]
  %s7 = inlined_call_operand.vmem [shape: f32[16,32], index: 7, kind: output, shape index: {}]
  %s8 = sld [smem:[#allocation0]]
  $region38: #{retrieval_patch_transformer.8} parent=0
    _
  %s10 = ssub.s32 1, %s8
  %s11 = scalar_select 0, %s10, %s8
  // Predicated region
  $region2: #{retrieval_patch_transformer.8} parent=0 // pred_check
    _
  $region3: #{retrieval_patch_transformer.8} parent=0 // pred_check_branch
    %13 = sbr.rel (0) target = $region5
  $region4: #{retrieval_patch_transformer.8} parent=0 // pred_region
    _
  $region5: #{retrieval_patch_transformer.8} parent=0 // pred_fallthru
    _
  // Predicated region
  $region6: #{retrieval_patch_transformer.8} parent=0 // pred_check
    _
  $region7: #{retrieval_patch_transformer.8} parent=0 // pred_check_branch
    %15 = sbr.rel (0) target = $region9
  $region8: #{retrieval_patch_transformer.8} parent=0 // pred_region
    _
  $region9: #{retrieval_patch_transformer.8} parent=0 // pred_fallthru
    _
  // Predicated region
  $region10: #{retrieval_patch_transformer.8} parent=0 // pred_check
    _
  $region11: #{retrieval_patch_transformer.8} parent=0 // pred_check_branch
    %17 = sbr.rel (0) target = $region13
  $region12: #{retrieval_patch_transformer.8} parent=0 // pred_region
    _
  $region13: #{retrieval_patch_transformer.8} parent=0 // pred_fallthru
    _
  // Predicated region
  $region14: #{retrieval_patch_transformer.8} parent=0 // pred_check
    _
  $region15: #{retrieval_patch_transformer.8} parent=0 // pred_check_branch
    %19 = sbr.rel (0) target = $region17
  $region16: #{retrieval_patch_transformer.8} parent=0 // pred_region
    _
  $region17: #{retrieval_patch_transformer.8} parent=0 // pred_fallthru
    _
  // Predicated region
  $region18: #{retrieval_patch_transformer.8} parent=0 // pred_check
    _
  $region19: #{retrieval_patch_transformer.8} parent=0 // pred_check_branch
    %21 = sbr.rel (0) target = $region21
  $region20: #{retrieval_patch_transformer.8} parent=0 // pred_region
    _
  $region21: #{retrieval_patch_transformer.8} parent=0 // pred_fallthru
    _
  // Predicated region
  $region22: #{retrieval_patch_transformer.8} parent=0 // pred_check
    _
  $region23: #{retrieval_patch_transformer.8} parent=0 // pred_check_branch
    %23 = sbr.rel (0) target = $region25
  $region24: #{retrieval_patch_transformer.8} parent=0 // pred_region
    _
  $region25: #{retrieval_patch_transformer.8} parent=0 // pred_fallthru
    _
  // Predicated region
  $region26: #{retrieval_patch_transformer.8} parent=0 // pred_check
    _
  $region27: #{retrieval_patch_transformer.8} parent=0 // pred_check_branch
    %25 = sbr.rel (0) target = $region29
  $region28: #{retrieval_patch_transformer.8} parent=0 // pred_region
    _
  $region29: #{retrieval_patch_transformer.8} parent=0 // pred_fallthru
    _
  %v26 = vld [vmem:[%s0] sm:$0xff]
  %v27 = vld [vmem:[%s0 + $0x8] sm:$0xff]
  %v28 = vld [vmem:[%s1] sm:$0x1]
  %v29 = vld [vmem:[%s2] sm:$0x1]
  %vm30 = vcmask 261120
  %v31 = vsel %vm30, %v26, 0.0
  %32 = vadd.xlane.f32.xlu0 %v31
  %v33 = vpop.xlane.xlu0 %32
  %v34 = vsel %vm30, %v27, 0.0
  %35 = vadd.xlane.f32.xlu0 %v34
  %v36 = vpop.xlane.xlu0 %35
  %v37 = vrcp.pop 32.0
  %v38 = vmul.f32 %v33, %v37
  %v39 = vmul.f32 %v36, %v37
  %v40 = vsub.f32 %v26, %v38
  %v41 = vsub.f32 %v27, %v39
  %v42 = vmul.f32 %v40, %v40
  %v43 = vmul.f32 %v41, %v41
  %v44 = vsel %vm30, %v42, 0.0
  %45 = vadd.xlane.f32.xlu0 %v44
  %v46 = vpop.xlane.xlu0 %45
  %v47 = vsel %vm30, %v43, 0.0
  %48 = vadd.xlane.f32.xlu0 %v47
  %v49 = vpop.xlane.xlu0 %48
  %v50 = vmul.f32 %v46, %v37
  %v51 = vmul.f32 %v49, %v37
  %v52 = vadd.f32 %v50, 1e-05
  %v53 = vadd.f32 %v51, 1e-05
  %v54 = vrsqrt.pop %v52
  %v55 = vrsqrt.pop %v53
  %v56 = vmul.f32 %v40, %v54
  %v57 = vmul.f32 %v41, %v55
  %v59 = vlaneseq
  %v60 = vshrl.u32 %v59, 7
  %v61 = vsub.s32 0, %v60
  %v62 = vrot.slane %v28, %v61
  %v64 = vmul.f32 %v56, %v62
  %v65 = vmul.f32 %v57, %v62
  %v67 = vlaneseq
  %v68 = vshrl.u32 %v67, 7
  %v69 = vsub.s32 0, %v68
  %v70 = vrot.slane %v29, %v69
  %v72 = vadd.f32 %v64, %v70
  %v73 = vadd.f32 %v65, %v70
  %v74 = vld [vmem:[%s3] sm:$0xff]
  %v75 = vld [vmem:[%s3 + $0x8] sm:$0xff]
  %v76 = vld [vmem:[%s3 + $0x10] sm:$0xff]
  %v77 = vld [vmem:[%s3 + $0x18] sm:$0xff]
  %v78 = vld [vmem:[%s3 + $0x20] sm:$0xff]
  %v79 = vld [vmem:[%s3 + $0x28] sm:$0xff]
  %v80 = vld [vmem:[%s3 + $0x30] sm:$0xff]
  %v81 = vld [vmem:[%s3 + $0x38] sm:$0xff]
  %v82 = vld [vmem:[%s4] sm:$0x3]
  %v84 = vlaneseq
  %v85 = vshrl.u32 %v84, 7
  %v86 = vsub.s32 0, %v85
  %v87 = vrot.slane %v82, %v86
  %v88 = vlaneseq
  %v89 = vshrl.u32 %v88, 7
  %v90 = vsub.s32 1, %v89
  %v91 = vrot.slane %v82, %v90
  %v95 = vsel %vm30, %v72, 0
  %v98 = vsel %vm30, %v73, 0
  %100 = vmatprep.subr.mxu0 0.0
  %101 = vmatpush1.msra.mxu0 0.0
  %102 = vmatprep.subr.mxu0 0.0
  %103 = vmatpush1.msra.mxu0 0.0
  %104 = vmatprep.subr.mxu0 0.0
  %105 = vmatpush1.msra.mxu0 0.0
  %106 = vmatprep.subr.mxu0 0.0
  %107 = vmatpush1.msra.mxu0 0.0
  %108 = vmatprep.subr.mxu0 0.0
  %109 = vmatpush1.msra.mxu0 0.0
  %110 = vmatprep.subr.mxu0 0.0
  %111 = vmatpush1.msra.mxu0 0.0
  %112 = vmatprep.subr.mxu0 0.0
  %113 = vmatpush1.msra.mxu0 0.0
  %114 = vmatprep.subr.mxu0 0.0
  %115 = vmatpush1.msra.mxu0 0.0
  %116 = vmatprep.subr.mxu0 0.0
  %117 = vmatpush1.msra.mxu0 0.0
  %118 = vmatprep.subr.mxu0 0.0
  %119 = vmatpush1.msra.mxu0 0.0
  %120 = vmatprep.subr.mxu0 0.0
  %121 = vmatpush1.msra.mxu0 0.0
  %122 = vmatprep.subr.mxu0 0.0
  %123 = vmatpush1.msra.mxu0 0.0
  %124 = vmatprep.subr.mxu0 %v81
  %125 = vmatpush1.msra.mxu0 %v80
  %126 = vmatprep.subr.mxu0 %v79
  %127 = vmatpush1.msra.mxu0 %v78
  %128 = vmatprep.subr.mxu0 %v77
  %129 = vmatpush1.msra.mxu0 %v76
  %130 = vmatprep.subr.mxu0 %v75
  %131 = vmatpush1.msra.mxu0 %v74
  %132 = vmatprep.subr.mxu0 0.0
  %133 = vmatpush2.msra.mxu0 0.0
  %134 = vmatprep.subr.mxu0 0.0
  %135 = vmatpush2.msra.mxu0 0.0
  %136 = vmatprep.subr.mxu0 0.0
  %137 = vmatpush2.msra.mxu0 0.0
  %138 = vmatprep.subr.mxu0 0.0
  %139 = vmatpush2.msra.mxu0 0.0
  %140 = vmatprep.subr.mxu0 0.0
  %141 = vmatpush2.msra.mxu0 0.0
  %142 = vmatprep.subr.mxu0 0.0
  %143 = vmatpush2.msra.mxu0 0.0
  %144 = vmatprep.subr.mxu0 0.0
  %145 = vmatpush2.msra.mxu0 0.0
  %146 = vmatprep.subr.mxu0 0.0
  %147 = vmatpush2.msra.mxu0 0.0
  %148 = vmatprep.subr.mxu0 0.0
  %149 = vmatpush2.msra.mxu0 0.0
  %150 = vmatprep.subr.mxu0 0.0
  %151 = vmatpush2.msra.mxu0 0.0
  %152 = vmatprep.subr.mxu0 0.0
  %153 = vmatpush2.msra.mxu0 0.0
  %154 = vmatprep.subr.mxu0 0.0
  %155 = vmatpush2.msra.mxu0 0.0
  %156 = vmatprep.subr.mxu0 0.0
  %157 = vmatpush2.msra.mxu0 0.0
  %158 = vmatprep.subr.mxu0 0.0
  %159 = vmatpush2.msra.mxu0 0.0
  %160 = vmatprep.subr.mxu0 0.0
  %161 = vmatpush2.msra.mxu0 0.0
  %162 = vmatprep.subr.mxu0 0.0
  %163 = vmatpush2.msra.mxu0 0.0
  %164 = vmatprep.mubr.f32.mxu0 0.0
  %165 = vmatmul.mubr.f32.gmra.mxu0 %v95
  %v166 = vpop.f32.mrf.mxu0
  %v167 = vadd.f32 %v87, %v166
  %v168 = vpop.f32.mrf.mxu0
  %v169 = vadd.f32 %v91, %v168
  %170 = vmatprep.mubr.f32.mxu0 0.0
  %171 = vmatmul.mubr.f32.gmra.mxu0 %v98
  %v172 = vpop.f32.mrf.mxu0
  %v173 = vadd.f32 %v87, %v172
  %v174 = vpop.f32.mrf.mxu0
  %v175 = vadd.f32 %v91, %v174
  %176 = vdwg.mxu0
  %v177 = vmul.f32 %v169, 0.5
  %v178 = vmul.f32 %v175, 0.5
  %v179 = vmul.f32 %v169, 0.70710677
  %v180 = vmul.f32 %v175, 0.70710677
  %v181 = verf.f32.pop %v179
  %v182 = verf.f32.pop %v180
  %v183 = vadd.f32 %v181, 1.0
  %v184 = vadd.f32 %v182, 1.0
  %v185 = vmul.f32 %v177, %v183
  %v186 = vmul.f32 %v178, %v184
  %v187 = vmul.f32 %v167, %v185
  %v188 = vmul.f32 %v173, %v186
  %v189 = vld [vmem:[%s5] sm:$0xff]
  %v190 = vld [vmem:[%s5 + $0x8] sm:$0xff]
  %v191 = vld [vmem:[%s5 + $0x10] sm:$0xff]
  %v192 = vld [vmem:[%s5 + $0x18] sm:$0xff]
  %v193 = vld [vmem:[%s5 + $0x20] sm:$0xff]
  %v194 = vld [vmem:[%s5 + $0x28] sm:$0xff]
  %v195 = vld [vmem:[%s5 + $0x30] sm:$0xff]
  %v196 = vld [vmem:[%s5 + $0x38] sm:$0xff]
  %v197 = vld [vmem:[%s5 + $0x40] sm:$0xff]
  %v198 = vld [vmem:[%s5 + $0x48] sm:$0xff]
  %v199 = vld [vmem:[%s5 + $0x50] sm:$0xff]
  %v200 = vld [vmem:[%s5 + $0x58] sm:$0xff]
  %v201 = vld [vmem:[%s5 + $0x60] sm:$0xff]
  %v202 = vld [vmem:[%s5 + $0x68] sm:$0xff]
  %v203 = vld [vmem:[%s5 + $0x70] sm:$0xff]
  %v204 = vld [vmem:[%s5 + $0x78] sm:$0xff]
  %v205 = vld [vmem:[%s6] sm:$0x1]
  %v207 = vlaneseq
  %v208 = vshrl.u32 %v207, 7
  %v209 = vsub.s32 0, %v208
  %v210 = vrot.slane %v205, %v209
  %212 = vmatprep.subr.mxu0 0.0
  %213 = vmatpush1.msra.mxu0 %v204
  %214 = vmatprep.subr.mxu0 0.0
  %215 = vmatpush1.msra.mxu0 %v203
  %216 = vmatprep.subr.mxu0 0.0
  %217 = vmatpush1.msra.mxu0 %v202
  %218 = vmatprep.subr.mxu0 0.0
  %219 = vmatpush1.msra.mxu0 %v201
  %220 = vmatprep.subr.mxu0 0.0
  %221 = vmatpush1.msra.mxu0 %v200
  %222 = vmatprep.subr.mxu0 0.0
  %223 = vmatpush1.msra.mxu0 %v199
  %224 = vmatprep.subr.mxu0 0.0
  %225 = vmatpush1.msra.mxu0 %v198
  %226 = vmatprep.subr.mxu0 0.0
  %227 = vmatpush1.msra.mxu0 %v197
  %228 = vmatprep.subr.mxu0 0.0
  %229 = vmatpush1.msra.mxu0 %v196
  %230 = vmatprep.subr.mxu0 0.0
  %231 = vmatpush1.msra.mxu0 %v195
  %232 = vmatprep.subr.mxu0 0.0
  %233 = vmatpush1.msra.mxu0 %v194
  %234 = vmatprep.subr.mxu0 0.0
  %235 = vmatpush1.msra.mxu0 %v193
  %236 = vmatprep.subr.mxu0 0.0
  %237 = vmatpush1.msra.mxu0 %v192
  %238 = vmatprep.subr.mxu0 0.0
  %239 = vmatpush1.msra.mxu0 %v191
  %240 = vmatprep.subr.mxu0 0.0
  %241 = vmatpush1.msra.mxu0 %v190
  %242 = vmatprep.subr.mxu0 0.0
  %243 = vmatpush1.msra.mxu0 %v189
  %244 = vmatprep.subr.mxu0 0.0
  %245 = vmatpush2.msra.mxu0 0.0
  %246 = vmatprep.subr.mxu0 0.0
  %247 = vmatpush2.msra.mxu0 0.0
  %248 = vmatprep.subr.mxu0 0.0
  %249 = vmatpush2.msra.mxu0 0.0
  %250 = vmatprep.subr.mxu0 0.0
  %251 = vmatpush2.msra.mxu0 0.0
  %252 = vmatprep.subr.mxu0 0.0
  %253 = vmatpush2.msra.mxu0 0.0
  %254 = vmatprep.subr.mxu0 0.0
  %255 = vmatpush2.msra.mxu0 0.0
  %256 = vmatprep.subr.mxu0 0.0
  %257 = vmatpush2.msra.mxu0 0.0
  %258 = vmatprep.subr.mxu0 0.0
  %259 = vmatpush2.msra.mxu0 0.0
  %260 = vmatprep.subr.mxu0 0.0
  %261 = vmatpush2.msra.mxu0 0.0
  %262 = vmatprep.subr.mxu0 0.0
  %263 = vmatpush2.msra.mxu0 0.0
  %264 = vmatprep.subr.mxu0 0.0
  %265 = vmatpush2.msra.mxu0 0.0
  %266 = vmatprep.subr.mxu0 0.0
  %267 = vmatpush2.msra.mxu0 0.0
  %268 = vmatprep.subr.mxu0 0.0
  %269 = vmatpush2.msra.mxu0 0.0
  %270 = vmatprep.subr.mxu0 0.0
  %271 = vmatpush2.msra.mxu0 0.0
  %272 = vmatprep.subr.mxu0 0.0
  %273 = vmatpush2.msra.mxu0 0.0
  %274 = vmatprep.subr.mxu0 0.0
  %275 = vmatpush2.msra.mxu0 0.0
  %276 = vmatprep.mubr.f32.mxu0 0.0
  %277 = vmatmul.mubr.f32.gmra.mxu0 %v187
  %v278 = vpop.f32.mrf.mxu0
  %v279 = vadd.f32 %v210, %v278
  %v280 = vpop.f32.mrf.mxu0
  %281 = vmatprep.mubr.f32.mxu0 0.0
  %282 = vmatmul.mubr.f32.gmra.mxu0 %v188
  %v283 = vpop.f32.mrf.mxu0
  %v284 = vadd.f32 %v210, %v283
  %v285 = vpop.f32.mrf.mxu0
  %286 = vdwg.mxu0
  %v287 = vadd.f32 %v279, %v26
  %v288 = vadd.f32 %v284, %v27
  %289 = vst.msk [vmem:[%s7] sm:$0xff] %vm30, %v287
  %290 = vst.msk [vmem:[%s7 + $0x8] sm:$0xff] %vm30, %v288
  // Predicated region
  $region30: #{retrieval_patch_transformer.8} parent=0 // pred_check
    _
  $region31: #{retrieval_patch_transformer.8} parent=0 // pred_check_branch
    %292 = sbr.rel (0) target = $region33
  $region32: #{retrieval_patch_transformer.8} parent=0 // pred_region
    _
  $region33: #{retrieval_patch_transformer.8} parent=0 // pred_fallthru
    _
  // Predicated region
  $region34: #{retrieval_patch_transformer.8} parent=0 // pred_check
    _
  $region35: #{retrieval_patch_transformer.8} parent=0 // pred_check_branch
    %294 = sbr.rel (0) target = $region37
  $region36: #{retrieval_patch_transformer.8} parent=0 // pred_region
    _
  $region37: #{retrieval_patch_transformer.8} parent=0 // pred_fallthru
    _

// kernel: retrieval_patch_transformer.6
$region0: #{retrieval_patch_transformer.6}
  #allocation0 [shape = 'u32[]', space=smem, size = 0x4, offset = 0x4, fixed_abs, tag = 'smem constant byte address 0x4 - core index']
  #allocation1 [shape = 'u32[144,128]{1,0:T(1,128)}', space=vmem, size = 0x12000, scoped, tag = 'internal scratch']
  %s0 = inlined_call_operand.vmem [shape: f32[2,8,32], index: 0, kind: input, shape index: {}]
  %s1 = inlined_call_operand.vmem [shape: f32[1,32], index: 1, kind: input, shape index: {}]
  %s2 = inlined_call_operand.vmem [shape: f32[1,32], index: 2, kind: input, shape index: {}]
  %s3 = inlined_call_operand.vmem [shape: f32[32,32], index: 3, kind: input, shape index: {}]
  %s4 = inlined_call_operand.vmem [shape: f32[32,32], index: 4, kind: input, shape index: {}]
  %s5 = inlined_call_operand.vmem [shape: f32[32,32], index: 5, kind: input, shape index: {}]
  %s6 = inlined_call_operand.vmem [shape: f32[32,32], index: 6, kind: input, shape index: {}]
  %s7 = inlined_call_operand.vmem [shape: f32[1,32], index: 7, kind: input, shape index: {}]
  %s8 = inlined_call_operand.vmem [shape: f32[2,8,32], index: 8, kind: output, shape index: {}]
  %s9 = sld [smem:[#allocation0]]
  $region65: #{retrieval_patch_transformer.6} parent=0
    _
  %s11 = ssub.s32 1, %s9
  %s12 = scalar_select 0, %s11, %s9
  loop: start=0, step=1, limit=4
  $region2: #{retrieval_patch_transformer.6} parent=0 // loop_pre_header
    _
  $region3: #{retrieval_patch_transformer.6} parent=0 // loop_header
    %s14 = sphi 0, %s18
    %p15 = scmp.ge.s32.totalorder %s14, 4
    %s24 = sphi 0, %s26
    %s27 = sphi 0, %s24
    %s28 = sphi 0, %s27
    %s44 = sphi 0, %s28
    %s48 = sphi 0, %s48
    %s50 = sphi 0, %s48
    %s51 = sphi 0, %s50
    %s65 = sphi 0, %s51
    %s69 = sphi 0, %s69
    %s71 = sphi 0, %s69
    %s72 = sphi 0, %s71
    %s86 = sphi 0, %s72
    %s90 = sphi 0, %s90
    %s92 = sphi 0, %s90
    %s93 = sphi 0, %s92
    %s107 = sphi 0, %s93
    %s111 = sphi 0, %s111
    %s113 = sphi 0, %s111
    %s114 = sphi 0, %s113
    %s128 = sphi 0, %s114
    %s132 = sphi 0, %s132
    %s134 = sphi 0, %s132
    %s135 = sphi 0, %s134
    %s149 = sphi 0, %s135
    %s153 = sphi 0, %s153
    %s155 = sphi 0, %s153
    %s156 = sphi 0, %s155
    %s170 = sphi 0, %s156
    %s174 = sphi 0, %s174
    %s176 = sphi 0, %s174
    %s177 = sphi 0, %s176
    %s191 = sphi 0, %s177
    %s197 = sphi 0, %s199
    %s200 = sphi 0, %s197
    %s201 = sphi 0, %s200
    %s217 = sphi 0, %s201
  $region4: #{retrieval_patch_transformer.6} parent=0 // loop_header_branch
    %17 = sbr.rel (%p15) target = $region8
  $region5: #{retrieval_patch_transformer.6} parent=0 // loop_body
    %s19 = ssub.s32 %s14, 1
    %s20 = ssub.s32 %s14, 2
    %s21 = sadd.s32 %s14, 1
    %s22 = ssub.s32 %s14, %s21
    %p23 = scmp.eq.s32.totalorder %s22, 0
    %s25 = sadd.s32 %s24, 1
    %s26 = scalar_select %p23, %s24, %s25
    %p29 = pneg %p23
    %p30 = scmp.eq.s32.totalorder %s14, 1
    %p31 = por %p29, %p30
    %p32 = scmp.ne.s32.totalorder %s24, %s27
    %p33 = scmp.eq.s32.totalorder %s14, 0
    %p34 = por %p32, %p33
    %p35 = scmp.ne.s32.totalorder %s24, %s27
    %p36 = scmp.eq.s32.totalorder %s19, 1
    %p37 = por %p35, %p36
    %p38 = scmp.ne.s32.totalorder %s27, %s28
    %p39 = scmp.eq.s32.totalorder %s19, 0
    %p40 = por %p38, %p39
    %p41 = scmp.ne.s32.totalorder %s27, %s28
    %p42 = scmp.eq.s32.totalorder %s20, 1
    %p43 = por %p41, %p42
    %p45 = scmp.ne.s32.totalorder %s28, %s44
    %p46 = scmp.eq.s32.totalorder %s20, 0
    %p47 = por %p45, %p46
    %s49 = sadd.s32 %s48, 1
    %p52 = scmp.eq.s32.totalorder %s14, 1
    %p53 = scmp.ne.s32.totalorder %s48, %s50
    %p54 = scmp.eq.s32.totalorder %s14, 0
    %p55 = por %p53, %p54
    %p56 = scmp.ne.s32.totalorder %s48, %s50
    %p57 = scmp.eq.s32.totalorder %s19, 1
    %p58 = por %p56, %p57
    %p59 = scmp.ne.s32.totalorder %s50, %s51
    %p60 = scmp.eq.s32.totalorder %s19, 0
    %p61 = por %p59, %p60
    %p62 = scmp.ne.s32.totalorder %s50, %s51
    %p63 = scmp.eq.s32.totalorder %s20, 1
    %p64 = por %p62, %p63
    %p66 = scmp.ne.s32.totalorder %s51, %s65
    %p67 = scmp.eq.s32.totalorder %s20, 0
    %p68 = por %p66, %p67
    %s70 = sadd.s32 %s69, 1
    %p73 = scmp.eq.s32.totalorder %s14, 1
    %p74 = scmp.ne.s32.totalorder %s69, %s71
    %p75 = scmp.eq.s32.totalorder %s14, 0
    %p76 = por %p74, %p75
    %p77 = scmp.ne.s32.totalorder %s69, %s71
    %p78 = scmp.eq.s32.totalorder %s19, 1
    %p79 = por %p77, %p78
    %p80 = scmp.ne.s32.totalorder %s71, %s72
    %p81 = scmp.eq.s32.totalorder %s19, 0
    %p82 = por %p80, %p81
    %p83 = scmp.ne.s32.totalorder %s71, %s72
    %p84 = scmp.eq.s32.totalorder %s20, 1
    %p85 = por %p83, %p84
    %p87 = scmp.ne.s32.totalorder %s72, %s86
    %p88 = scmp.eq.s32.totalorder %s20, 0
    %p89 = por %p87, %p88
    %s91 = sadd.s32 %s90, 1
    %p94 = scmp.eq.s32.totalorder %s14, 1
    %p95 = scmp.ne.s32.totalorder %s90, %s92
    %p96 = scmp.eq.s32.totalorder %s14, 0
    %p97 = por %p95, %p96
    %p98 = scmp.ne.s32.totalorder %s90, %s92
    %p99 = scmp.eq.s32.totalorder %s19, 1
    %p100 = por %p98, %p99
    %p101 = scmp.ne.s32.totalorder %s92, %s93
    %p102 = scmp.eq.s32.totalorder %s19, 0
    %p103 = por %p101, %p102
    %p104 = scmp.ne.s32.totalorder %s92, %s93
    %p105 = scmp.eq.s32.totalorder %s20, 1
    %p106 = por %p104, %p105
    %p108 = scmp.ne.s32.totalorder %s93, %s107
    %p109 = scmp.eq.s32.totalorder %s20, 0
    %p110 = por %p108, %p109
    %s112 = sadd.s32 %s111, 1
    %p115 = scmp.eq.s32.totalorder %s14, 1
    %p116 = scmp.ne.s32.totalorder %s111, %s113
    %p117 = scmp.eq.s32.totalorder %s14, 0
    %p118 = por %p116, %p117
    %p119 = scmp.ne.s32.totalorder %s111, %s113
    %p120 = scmp.eq.s32.totalorder %s19, 1
    %p121 = por %p119, %p120
    %p122 = scmp.ne.s32.totalorder %s113, %s114
    %p123 = scmp.eq.s32.totalorder %s19, 0
    %p124 = por %p122, %p123
    %p125 = scmp.ne.s32.totalorder %s113, %s114
    %p126 = scmp.eq.s32.totalorder %s20, 1
    %p127 = por %p125, %p126
    %p129 = scmp.ne.s32.totalorder %s114, %s128
    %p130 = scmp.eq.s32.totalorder %s20, 0
    %p131 = por %p129, %p130
    %s133 = sadd.s32 %s132, 1
    %p136 = scmp.eq.s32.totalorder %s14, 1
    %p137 = scmp.ne.s32.totalorder %s132, %s134
    %p138 = scmp.eq.s32.totalorder %s14, 0
    %p139 = por %p137, %p138
    %p140 = scmp.ne.s32.totalorder %s132, %s134
    %p141 = scmp.eq.s32.totalorder %s19, 1
    %p142 = por %p140, %p141
    %p143 = scmp.ne.s32.totalorder %s134, %s135
    %p144 = scmp.eq.s32.totalorder %s19, 0
    %p145 = por %p143, %p144
    %p146 = scmp.ne.s32.totalorder %s134, %s135
    %p147 = scmp.eq.s32.totalorder %s20, 1
    %p148 = por %p146, %p147
    %p150 = scmp.ne.s32.totalorder %s135, %s149
    %p151 = scmp.eq.s32.totalorder %s20, 0
    %p152 = por %p150, %p151
    %s154 = sadd.s32 %s153, 1
    %p157 = scmp.eq.s32.totalorder %s14, 1
    %p158 = scmp.ne.s32.totalorder %s153, %s155
    %p159 = scmp.eq.s32.totalorder %s14, 0
    %p160 = por %p158, %p159
    %p161 = scmp.ne.s32.totalorder %s153, %s155
    %p162 = scmp.eq.s32.totalorder %s19, 1
    %p163 = por %p161, %p162
    %p164 = scmp.ne.s32.totalorder %s155, %s156
    %p165 = scmp.eq.s32.totalorder %s19, 0
    %p166 = por %p164, %p165
    %p167 = scmp.ne.s32.totalorder %s155, %s156
    %p168 = scmp.eq.s32.totalorder %s20, 1
    %p169 = por %p167, %p168
    %p171 = scmp.ne.s32.totalorder %s156, %s170
    %p172 = scmp.eq.s32.totalorder %s20, 0
    %p173 = por %p171, %p172
    %s175 = sadd.s32 %s174, 1
    %p178 = scmp.eq.s32.totalorder %s14, 1
    %p179 = scmp.ne.s32.totalorder %s174, %s176
    %p180 = scmp.eq.s32.totalorder %s14, 0
    %p181 = por %p179, %p180
    %p182 = scmp.ne.s32.totalorder %s174, %s176
    %p183 = scmp.eq.s32.totalorder %s19, 1
    %p184 = por %p182, %p183
    %p185 = scmp.ne.s32.totalorder %s176, %s177
    %p186 = scmp.eq.s32.totalorder %s19, 0
    %p187 = por %p185, %p186
    %p188 = scmp.ne.s32.totalorder %s176, %s177
    %p189 = scmp.eq.s32.totalorder %s20, 1
    %p190 = por %p188, %p189
    %p192 = scmp.ne.s32.totalorder %s177, %s191
    %p193 = scmp.eq.s32.totalorder %s20, 0
    %p194 = por %p192, %p193
    %s195 = ssub.s32 %s14, %s21
    %p196 = scmp.eq.s32.totalorder %s195, 0
    %s198 = sadd.s32 %s197, 1
    %s199 = scalar_select %p196, %s197, %s198
    %p202 = pneg %p196
    %p203 = scmp.eq.s32.totalorder %s14, 1
    %p204 = por %p202, %p203
    %p205 = scmp.ne.s32.totalorder %s197, %s200
    %p206 = scmp.eq.s32.totalorder %s14, 0
    %p207 = por %p205, %p206
    %p208 = scmp.ne.s32.totalorder %s197, %s200
    %p209 = scmp.eq.s32.totalorder %s19, 1
    %p210 = por %p208, %p209
    %p211 = scmp.ne.s32.totalorder %s200, %s201
    %p212 = scmp.eq.s32.totalorder %s19, 0
    %p213 = por %p211, %p212
    %p214 = scmp.ne.s32.totalorder %s200, %s201
    %p215 = scmp.eq.s32.totalorder %s20, 1
    %p216 = por %p214, %p215
    %p218 = scmp.ne.s32.totalorder %s201, %s217
    %p219 = scmp.eq.s32.totalorder %s20, 0
    %p220 = por %p218, %p219
    %p221 = scmp.le.s32.totalorder 1, %s14
    %p222 = scmp.lt.s32.totalorder %s14, 3
    %p223 = pnand %p221, %p222
    %p224 = pneg %p223
    // Predicated region
    $region9: #{retrieval_patch_transformer.6} parent=5 // pred_check
      _
    $region10: #{retrieval_patch_transformer.6} parent=5 // pred_check_branch
      %226 = sbr.rel (%p223) target = $region12
    $region11: #{retrieval_patch_transformer.6} parent=5 // pred_region
      %s227 = ssub.s32 %s14, 1
      // Predicated region
      $region13: #{retrieval_patch_transformer.6} parent=11 // pred_check
        %p228 = pneg %p61
      $region14: #{retrieval_patch_transformer.6} parent=11 // pred_check_branch
        %230 = sbr.rel (%p228) target = $region16
      $region15: #{retrieval_patch_transformer.6} parent=11 // pred_region
        _
      $region16: #{retrieval_patch_transformer.6} parent=11 // pred_fallthru
        _
      // Predicated region
      $region17: #{retrieval_patch_transformer.6} parent=11 // pred_check
        %p231 = pneg %p82
      $region18: #{retrieval_patch_transformer.6} parent=11 // pred_check_branch
        %233 = sbr.rel (%p231) target = $region20
      $region19: #{retrieval_patch_transformer.6} parent=11 // pred_region
        _
      $region20: #{retrieval_patch_transformer.6} parent=11 // pred_fallthru
        _
      // Predicated region
      $region21: #{retrieval_patch_transformer.6} parent=11 // pred_check
        %p234 = pneg %p103
      $region22: #{retrieval_patch_transformer.6} parent=11 // pred_check_branch
        %236 = sbr.rel (%p234) target = $region24
      $region23: #{retrieval_patch_transformer.6} parent=11 // pred_region
        _
      $region24: #{retrieval_patch_transformer.6} parent=11 // pred_fallthru
        _
      // Predicated region
      $region25: #{retrieval_patch_transformer.6} parent=11 // pred_check
        %p237 = pneg %p124
      $region26: #{retrieval_patch_transformer.6} parent=11 // pred_check_branch
        %239 = sbr.rel (%p237) target = $region28
      $region27: #{retrieval_patch_transformer.6} parent=11 // pred_region
        _
      $region28: #{retrieval_patch_transformer.6} parent=11 // pred_fallthru
        _
      // Predicated region
      $region29: #{retrieval_patch_transformer.6} parent=11 // pred_check
        %p240 = pneg %p145
      $region30: #{retrieval_patch_transformer.6} parent=11 // pred_check_branch
        %242 = sbr.rel (%p240) target = $region32
      $region31: #{retrieval_patch_transformer.6} parent=11 // pred_region
        _
      $region32: #{retrieval_patch_transformer.6} parent=11 // pred_fallthru
        _
      // Predicated region
      $region33: #{retrieval_patch_transformer.6} parent=11 // pred_check
        %p243 = pneg %p166
      $region34: #{retrieval_patch_transformer.6} parent=11 // pred_check_branch
        %245 = sbr.rel (%p243) target = $region36
      $region35: #{retrieval_patch_transformer.6} parent=11 // pred_region
        _
      $region36: #{retrieval_patch_transformer.6} parent=11 // pred_fallthru
        _
      // Predicated region
      $region37: #{retrieval_patch_transformer.6} parent=11 // pred_check
        %p246 = pneg %p187
      $region38: #{retrieval_patch_transformer.6} parent=11 // pred_check_branch
        %248 = sbr.rel (%p246) target = $region40
      $region39: #{retrieval_patch_transformer.6} parent=11 // pred_region
        _
      $region40: #{retrieval_patch_transformer.6} parent=11 // pred_fallthru
        _
    $region12: #{retrieval_patch_transformer.6} parent=5 // pred_fallthru
      _
    %p249 = scmp.lt.s32.totalorder %s14, 2
    // Predicated region
    $region41: #{retrieval_patch_transformer.6} parent=5 // pred_check
      %p250 = pneg %p249
    $region42: #{retrieval_patch_transformer.6} parent=5 // pred_check_branch
      %252 = sbr.rel (%p250) target = $region44
    $region43: #{retrieval_patch_transformer.6} parent=5 // pred_region
      // Predicated region
      $region45: #{retrieval_patch_transformer.6} parent=43 // pred_check
        %p253 = pneg %p34
      $region46: #{retrieval_patch_transformer.6} parent=43 // pred_check_branch
        %255 = sbr.rel (%p253) target = $region48
      $region47: #{retrieval_patch_transformer.6} parent=43 // pred_region
        %p256 = scmp.lt.s32.totalorder %s14, 1
        %s257 = scalar_select %p256, %s14, 1
        %s258 = smul.addr %s257, 8
        %s259 = scalar_lea.vmem %s0, %s258
      $region48: #{retrieval_patch_transformer.6} parent=43 // pred_fallthru
        _
    $region44: #{retrieval_patch_transformer.6} parent=5 // pred_fallthru
      _
    %p260 = scmp.le.s32.totalorder 1, %s14
    %p261 = scmp.lt.s32.totalorder %s14, 3
    %p262 = pnand %p260, %p261
    %p263 = pneg %p262
    // Predicated region
    $region49: #{retrieval_patch_transformer.6} parent=5 // pred_check
      _
    $region50: #{retrieval_patch_transformer.6} parent=5 // pred_check_branch
      %265 = sbr.rel (%p262) target = $region52
    $region51: #{retrieval_patch_transformer.6} parent=5 // pred_region
      %s266 = ssub.s32 %s14, 1
      %p267 = scmp.lt.s32.totalorder %s19, 1
      %s268 = scalar_select %p267, %s19, 1
      %s269 = smul.addr %s268, 8
      %s270 = scalar_lea.vmem %s0, %s269
      %p271 = pneg %p40
      %p272 = pneg %p37
      %p273 = pneg %p61
      %p274 = pneg %p58
      %p275 = pneg %p82
      %p276 = pneg %p79
      %p277 = pneg %p103
      %p278 = pneg %p100
      %p279 = pneg %p124
      %p280 = pneg %p121
      %p281 = pneg %p145
      %p282 = pneg %p142
      %p283 = pneg %p166
      %p284 = pneg %p163
      %p285 = pneg %p187
      %p286 = pneg %p184
      %p287 = pneg %p213
      %p288 = pneg %p210
      %p289 = scmp.lt.s32.totalorder %s19, 1
      %s290 = scalar_select %p289, %s19, 1
      %s291 = smul.addr %s290, 8
      %s292 = scalar_lea.vmem %s8, %s291
      %p293 = scmp.lt.s32.totalorder %s19, 1
      %s294 = scalar_select %p293, %s19, 1
      %s295 = smul.addr %s294, 8
      %s296 = scalar_lea.vmem %s0, %s295
      %p297 = scmp.lt.s32.totalorder %s19, 1
      %s298 = scalar_select %p297, %s19, 1
      %s299 = smul.addr %s298, 8
      %s300 = scalar_lea.vmem %s8, %s299
      %v301 = vld [vmem:[%s296] sm:$0xff]
      %v302 = vld [vmem:[%s1] sm:$0x1]
      %v303 = vld [vmem:[%s2] sm:$0x1]
      %vm304 = vcmask 261120
      %v305 = vsel %vm304, %v301, 0.0
      %306 = vadd.xlane.f32.xlu0 %v305
      %v307 = vpop.xlane.xlu0 %306
      %v308 = vrcp.pop 32.0
      %v309 = vmul.f32 %v307, %v308
      %v310 = vsub.f32 %v301, %v309
      %v311 = vmul.f32 %v310, %v310
      %v312 = vsel %vm304, %v311, 0.0
      %313 = vadd.xlane.f32.xlu0 %v312
      %v314 = vpop.xlane.xlu0 %313
      %v315 = vmul.f32 %v314, %v308
      %v316 = vadd.f32 %v315, 1e-05
      %v317 = vrsqrt.pop %v316
      %v318 = vmul.f32 %v310, %v317
      %v320 = vlaneseq
      %v321 = vshrl.u32 %v320, 7
      %v322 = vsub.s32 0, %v321
      %v323 = vrot.slane %v302, %v322
      %v325 = vmul.f32 %v318, %v323
      %v327 = vlaneseq
      %v328 = vshrl.u32 %v327, 7
      %v329 = vsub.s32 0, %v328
      %v330 = vrot.slane %v303, %v329
      %v332 = vadd.f32 %v325, %v330
      %v333 = vld [vmem:[%s3] sm:$0xff]
      %v334 = vld [vmem:[%s3 + $0x8] sm:$0xff]
      %v335 = vld [vmem:[%s3 + $0x10] sm:$0xff]
      %v336 = vld [vmem:[%s3 + $0x18] sm:$0xff]
      %v338 = vsel %vm304, %v332, 0
      %340 = vmatprep.subr.mxu0 0.0
      %341 = vmatpush1.msra.mxu0 0.0
      %342 = vmatprep.subr.mxu0 0.0
      %343 = vmatpush1.msra.mxu0 0.0
      %344 = vmatprep.subr.mxu0 0.0
      %345 = vmatpush1.msra.mxu0 0.0
      %346 = vmatprep.subr.mxu0 0.0
      %347 = vmatpush1.msra.mxu0 0.0
      %348 = vmatprep.subr.mxu0 0.0
      %349 = vmatpush1.msra.mxu0 0.0
      %350 = vmatprep.subr.mxu0 0.0
      %351 = vmatpush1.msra.mxu0 0.0
      %352 = vmatprep.subr.mxu0 0.0
      %353 = vmatpush1.msra.mxu0 0.0
      %354 = vmatprep.subr.mxu0 0.0
      %355 = vmatpush1.msra.mxu0 0.0
      %356 = vmatprep.subr.mxu0 0.0
      %357 = vmatpush1.msra.mxu0 0.0
      %358 = vmatprep.subr.mxu0 0.0
      %359 = vmatpush1.msra.mxu0 0.0
      %360 = vmatprep.subr.mxu0 0.0
      %361 = vmatpush1.msra.mxu0 0.0
      %362 = vmatprep.subr.mxu0 0.0
      %363 = vmatpush1.msra.mxu0 0.0
      %364 = vmatprep.subr.mxu0 0.0
      %365 = vmatpush1.msra.mxu0 %v336
      %366 = vmatprep.subr.mxu0 0.0
      %367 = vmatpush1.msra.mxu0 %v335
      %368 = vmatprep.subr.mxu0 0.0
      %369 = vmatpush1.msra.mxu0 %v334
      %370 = vmatprep.subr.mxu0 0.0
      %371 = vmatpush1.msra.mxu0 %v333
      %372 = vmatprep.subr.mxu0 0.0
      %373 = vmatpush2.msra.mxu0 0.0
      %374 = vmatprep.subr.mxu0 0.0
      %375 = vmatpush2.msra.mxu0 0.0
      %376 = vmatprep.subr.mxu0 0.0
      %377 = vmatpush2.msra.mxu0 0.0
      %378 = vmatprep.subr.mxu0 0.0
      %379 = vmatpush2.msra.mxu0 0.0
      %380 = vmatprep.subr.mxu0 0.0
      %381 = vmatpush2.msra.mxu0 0.0
      %382 = vmatprep.subr.mxu0 0.0
      %383 = vmatpush2.msra.mxu0 0.0
      %384 = vmatprep.subr.mxu0 0.0
      %385 = vmatpush2.msra.mxu0 0.0
      %386 = vmatprep.subr.mxu0 0.0
      %387 = vmatpush2.msra.mxu0 0.0
      %388 = vmatprep.subr.mxu0 0.0
      %389 = vmatpush2.msra.mxu0 0.0
      %390 = vmatprep.subr.mxu0 0.0
      %391 = vmatpush2.msra.mxu0 0.0
      %392 = vmatprep.subr.mxu0 0.0
      %393 = vmatpush2.msra.mxu0 0.0
      %394 = vmatprep.subr.mxu0 0.0
      %395 = vmatpush2.msra.mxu0 0.0
      %396 = vmatprep.subr.mxu0 0.0
      %397 = vmatpush2.msra.mxu0 0.0
      %398 = vmatprep.subr.mxu0 0.0
      %399 = vmatpush2.msra.mxu0 0.0
      %400 = vmatprep.subr.mxu0 0.0
      %401 = vmatpush2.msra.mxu0 0.0
      %402 = vmatprep.subr.mxu0 0.0
      %403 = vmatpush2.msra.mxu0 0.0
      %404 = vmatprep.mubr.f32.mxu0 0.0
      %405 = vmatmul.mubr.f32.gmra.mxu0 %v338
      %v406 = vpop.f32.mrf.mxu0
      %v407 = vadd.f32 0.0, %v406
      %v408 = vpop.f32.mrf.mxu0
      %409 = vdwg.mxu0
      %v410 = vmul.f32 %v407, 0.25
      %v411 = vld [vmem:[%s4] sm:$0xff]
      %v412 = vld [vmem:[%s4 + $0x8] sm:$0xff]
      %v413 = vld [vmem:[%s4 + $0x10] sm:$0xff]
      %v414 = vld [vmem:[%s4 + $0x18] sm:$0xff]
      %415 = vmatprep.subr.mxu0 0.0
      %416 = vmatpush1.msra.mxu0 0.0
      %417 = vmatprep.subr.mxu0 0.0
      %418 = vmatpush1.msra.mxu0 0.0
      %419 = vmatprep.subr.mxu0 0.0
      %420 = vmatpush1.msra.mxu0 0.0
      %421 = vmatprep.subr.mxu0 0.0
      %422 = vmatpush1.msra.mxu0 0.0
      %423 = vmatprep.subr.mxu0 0.0
      %424 = vmatpush1.msra.mxu0 0.0
      %425 = vmatprep.subr.mxu0 0.0
      %426 = vmatpush1.msra.mxu0 0.0
      %427 = vmatprep.subr.mxu0 0.0
      %428 = vmatpush1.msra.mxu0 0.0
      %429 = vmatprep.subr.mxu0 0.0
      %430 = vmatpush1.msra.mxu0 0.0
      %431 = vmatprep.subr.mxu0 0.0
      %432 = vmatpush1.msra.mxu0 0.0
      %433 = vmatprep.subr.mxu0 0.0
      %434 = vmatpush1.msra.mxu0 0.0
      %435 = vmatprep.subr.mxu0 0.0
      %436 = vmatpush1.msra.mxu0 0.0
      %437 = vmatprep.subr.mxu0 0.0
      %438 = vmatpush1.msra.mxu0 0.0
      %439 = vmatprep.subr.mxu0 0.0
      %440 = vmatpush1.msra.mxu0 %v414
      %441 = vmatprep.subr.mxu0 0.0
      %442 = vmatpush1.msra.mxu0 %v413
      %443 = vmatprep.subr.mxu0 0.0
      %444 = vmatpush1.msra.mxu0 %v412
      %445 = vmatprep.subr.mxu0 0.0
      %446 = vmatpush1.msra.mxu0 %v411
      %447 = vmatprep.subr.mxu0 0.0
      %448 = vmatpush2.msra.mxu0 0.0
      %449 = vmatprep.subr.mxu0 0.0
      %450 = vmatpush2.msra.mxu0 0.0
      %451 = vmatprep.subr.mxu0 0.0
      %452 = vmatpush2.msra.mxu0 0.0
      %453 = vmatprep.subr.mxu0 0.0
      %454 = vmatpush2.msra.mxu0 0.0
      %455 = vmatprep.subr.mxu0 0.0
      %456 = vmatpush2.msra.mxu0 0.0
      %457 = vmatprep.subr.mxu0 0.0
      %458 = vmatpush2.msra.mxu0 0.0
      %459 = vmatprep.subr.mxu0 0.0
      %460 = vmatpush2.msra.mxu0 0.0
      %461 = vmatprep.subr.mxu0 0.0
      %462 = vmatpush2.msra.mxu0 0.0
      %463 = vmatprep.subr.mxu0 0.0
      %464 = vmatpush2.msra.mxu0 0.0
      %465 = vmatprep.subr.mxu0 0.0
      %466 = vmatpush2.msra.mxu0 0.0
      %467 = vmatprep.subr.mxu0 0.0
      %468 = vmatpush2.msra.mxu0 0.0
      %469 = vmatprep.subr.mxu0 0.0
      %470 = vmatpush2.msra.mxu0 0.0
      %471 = vmatprep.subr.mxu0 0.0
      %472 = vmatpush2.msra.mxu0 0.0
      %473 = vmatprep.subr.mxu0 0.0
      %474 = vmatpush2.msra.mxu0 0.0
      %475 = vmatprep.subr.mxu0 0.0
      %476 = vmatpush2.msra.mxu0 0.0
      %477 = vmatprep.subr.mxu0 0.0
      %478 = vmatpush2.msra.mxu0 0.0
      %479 = vmatprep.mubr.f32.mxu0 0.0
      %480 = vmatmul.mubr.f32.gmra.mxu0 %v338
      %v481 = vpop.f32.mrf.mxu0
      %v482 = vadd.f32 0.0, %v481
      %v483 = vpop.f32.mrf.mxu0
      %484 = vdwg.mxu0
      %v485 = vld [vmem:[%s5] sm:$0xff]
      %v486 = vld [vmem:[%s5 + $0x8] sm:$0xff]
      %v487 = vld [vmem:[%s5 + $0x10] sm:$0xff]
      %v488 = vld [vmem:[%s5 + $0x18] sm:$0xff]
      %489 = vmatprep.subr.mxu0 0.0
      %490 = vmatpush1.msra.mxu0 0.0
      %491 = vmatprep.subr.mxu0 0.0
      %492 = vmatpush1.msra.mxu0 0.0
      %493 = vmatprep.subr.mxu0 0.0
      %494 = vmatpush1.msra.mxu0 0.0
      %495 = vmatprep.subr.mxu0 0.0
      %496 = vmatpush1.msra.mxu0 0.0
      %497 = vmatprep.subr.mxu0 0.0
      %498 = vmatpush1.msra.mxu0 0.0
      %499 = vmatprep.subr.mxu0 0.0
      %500 = vmatpush1.msra.mxu0 0.0
      %501 = vmatprep.subr.mxu0 0.0
      %502 = vmatpush1.msra.mxu0 0.0
      %503 = vmatprep.subr.mxu0 0.0
      %504 = vmatpush1.msra.mxu0 0.0
      %505 = vmatprep.subr.mxu0 0.0
      %506 = vmatpush1.msra.mxu0 0.0
      %507 = vmatprep.subr.mxu0 0.0
      %508 = vmatpush1.msra.mxu0 0.0
      %509 = vmatprep.subr.mxu0 0.0
      %510 = vmatpush1.msra.mxu0 0.0
      %511 = vmatprep.subr.mxu0 0.0
      %512 = vmatpush1.msra.mxu0 0.0
      %513 = vmatprep.subr.mxu0 0.0
      %514 = vmatpush1.msra.mxu0 %v488
      %515 = vmatprep.subr.mxu0 0.0
      %516 = vmatpush1.msra.mxu0 %v487
      %517 = vmatprep.subr.mxu0 0.0
      %518 = vmatpush1.msra.mxu0 %v486
      %519 = vmatprep.subr.mxu0 0.0
      %520 = vmatpush1.msra.mxu0 %v485
      %521 = vmatprep.subr.mxu0 0.0
      %522 = vmatpush2.msra.mxu0 0.0
      %523 = vmatprep.subr.mxu0 0.0
      %524 = vmatpush2.msra.mxu0 0.0
      %525 = vmatprep.subr.mxu0 0.0
      %526 = vmatpush2.msra.mxu0 0.0
      %527 = vmatprep.subr.mxu0 0.0
      %528 = vmatpush2.msra.mxu0 0.0
      %529 = vmatprep.subr.mxu0 0.0
      %530 = vmatpush2.msra.mxu0 0.0
      %531 = vmatprep.subr.mxu0 0.0
      %532 = vmatpush2.msra.mxu0 0.0
      %533 = vmatprep.subr.mxu0 0.0
      %534 = vmatpush2.msra.mxu0 0.0
      %535 = vmatprep.subr.mxu0 0.0
      %536 = vmatpush2.msra.mxu0 0.0
      %537 = vmatprep.subr.mxu0 0.0
      %538 = vmatpush2.msra.mxu0 0.0
      %539 = vmatprep.subr.mxu0 0.0
      %540 = vmatpush2.msra.mxu0 0.0
      %541 = vmatprep.subr.mxu0 0.0
      %542 = vmatpush2.msra.mxu0 0.0
      %543 = vmatprep.subr.mxu0 0.0
      %544 = vmatpush2.msra.mxu0 0.0
      %545 = vmatprep.subr.mxu0 0.0
      %546 = vmatpush2.msra.mxu0 0.0
      %547 = vmatprep.subr.mxu0 0.0
      %548 = vmatpush2.msra.mxu0 0.0
      %549 = vmatprep.subr.mxu0 0.0
      %550 = vmatpush2.msra.mxu0 0.0
      %551 = vmatprep.subr.mxu0 0.0
      %552 = vmatpush2.msra.mxu0 0.0
      %553 = vmatprep.mubr.f32.mxu0 0.0
      %554 = vmatmul.mubr.f32.gmra.mxu0 %v338
      %v555 = vpop.f32.mrf.mxu0
      %v556 = vadd.f32 0.0, %v555
      %v557 = vpop.f32.mrf.mxu0
      %558 = vdwg.mxu0
      %v559 = vld [vmem:[%s6] sm:$0xff]
      %v560 = vld [vmem:[%s6 + $0x8] sm:$0xff]
      %v561 = vld [vmem:[%s6 + $0x10] sm:$0xff]
      %v562 = vld [vmem:[%s6 + $0x18] sm:$0xff]
      %vm563 = vcmask 130048
      %v565 = vsel %vm563, %v410, 0
      %v568 = vsel %vm563, %v482, 0
      %570 = vmatprep.subr.mxu0 0.0
      %571 = vmatpush1.xpose.msra.mxu0 0.0
      %572 = vmatprep.subr.mxu0 0.0
      %573 = vmatpush1.xpose.msra.mxu0 0.0
      %574 = vmatprep.subr.mxu0 0.0
      %575 = vmatpush1.xpose.msra.mxu0 0.0
      %576 = vmatprep.subr.mxu0 0.0
      %577 = vmatpush1.xpose.msra.mxu0 0.0
      %578 = vmatprep.subr.mxu0 0.0
      %579 = vmatpush1.xpose.msra.mxu0 0.0
      %580 = vmatprep.subr.mxu0 0.0
      %581 = vmatpush1.xpose.msra.mxu0 0.0
      %582 = vmatprep.subr.mxu0 0.0
      %583 = vmatpush1.xpose.msra.mxu0 0.0
      %584 = vmatprep.subr.mxu0 0.0
      %585 = vmatpush1.xpose.msra.mxu0 0.0
      %586 = vmatprep.subr.mxu0 0.0
      %587 = vmatpush1.xpose.msra.mxu0 0.0
      %588 = vmatprep.subr.mxu0 0.0
      %589 = vmatpush1.xpose.msra.mxu0 0.0
      %590 = vmatprep.subr.mxu0 0.0
      %591 = vmatpush1.xpose.msra.mxu0 0.0
      %592 = vmatprep.subr.mxu0 0.0
      %593 = vmatpush1.xpose.msra.mxu0 0.0
      %594 = vmatprep.subr.mxu0 0.0
      %595 = vmatpush1.xpose.msra.mxu0 0.0
      %596 = vmatprep.subr.mxu0 0.0
      %597 = vmatpush1.xpose.msra.mxu0 0.0
      %598 = vmatprep.subr.mxu0 0.0
      %599 = vmatpush1.xpose.msra.mxu0 0.0
      %600 = vmatprep.subr.mxu0 0.0
      %601 = vmatpush1.xpose.msra.mxu0 %v568
      %602 = vmatprep.subr.mxu0 0.0
      %603 = vmatpush2.xpose.msra.mxu0 0.0
      %604 = vmatprep.subr.mxu0 0.0
      %605 = vmatpush2.xpose.msra.mxu0 0.0
      %606 = vmatprep.subr.mxu0 0.0
      %607 = vmatpush2.xpose.msra.mxu0 0.0
      %608 = vmatprep.subr.mxu0 0.0
      %609 = vmatpush2.xpose.msra.mxu0 0.0
      %610 = vmatprep.subr.mxu0 0.0
      %611 = vmatpush2.xpose.msra.mxu0 0.0
      %612 = vmatprep.subr.mxu0 0.0
      %613 = vmatpush2.xpose.msra.mxu0 0.0
      %614 = vmatprep.subr.mxu0 0.0
      %615 = vmatpush2.xpose.msra.mxu0 0.0
      %616 = vmatprep.subr.mxu0 0.0
      %617 = vmatpush2.xpose.msra.mxu0 0.0
      %618 = vmatprep.subr.mxu0 0.0
      %619 = vmatpush2.xpose.msra.mxu0 0.0
      %620 = vmatprep.subr.mxu0 0.0
      %621 = vmatpush2.xpose.msra.mxu0 0.0
      %622 = vmatprep.subr.mxu0 0.0
      %623 = vmatpush2.xpose.msra.mxu0 0.0
      %624 = vmatprep.subr.mxu0 0.0
      %625 = vmatpush2.xpose.msra.mxu0 0.0
      %626 = vmatprep.subr.mxu0 0.0
      %627 = vmatpush2.xpose.msra.mxu0 0.0
      %628 = vmatprep.subr.mxu0 0.0
      %629 = vmatpush2.xpose.msra.mxu0 0.0
      %630 = vmatprep.subr.mxu0 0.0
      %631 = vmatpush2.xpose.msra.mxu0 0.0
      %632 = vmatprep.subr.mxu0 0.0
      %633 = vmatpush2.xpose.msra.mxu0 0.0
      %634 = vmatprep.mubr.f32.mxu0 0.0
      %635 = vmatmul.mubr.f32.gmra.mxu0 %v565
      %v636 = vpop.f32.mrf.mxu0
      %v637 = vadd.f32 0.0, %v636
      %v638 = vpop.f32.mrf.mxu0
      %639 = vdwg.mxu0
      %vm640 = vcmask 64512
      %v641 = vsel %vm640, %v637, -inf
      %642 = vmax.xlane.f32.xlu0 %v641
      %v643 = vpop.xlane.xlu0 %642
      %v644 = vsub.f32 %v637, %v643
      %v645 = vmul.f32 %v644, 1.442695
      %v646 = vpow.pop %v645
      %v647 = vsel %vm640, %v646, 0.0
      %648 = vadd.xlane.f32.xlu0 %v647
      %v649 = vpop.xlane.xlu0 %648
      %v650 = vrcp.pop %v649
      %v651 = vmul.f32 %v646, %v650
      %v653 = vsel %vm640, %v651, 0
      %655 = vmatprep.subr.mxu0 0.0
      %656 = vmatpush1.msra.mxu0 0.0
      %657 = vmatprep.subr.mxu0 0.0
      %658 = vmatpush1.msra.mxu0 0.0
      %659 = vmatprep.subr.mxu0 0.0
      %660 = vmatpush1.msra.mxu0 0.0
      %661 = vmatprep.subr.mxu0 0.0
      %662 = vmatpush1.msra.mxu0 0.0
      %663 = vmatprep.subr.mxu0 0.0
      %664 = vmatpush1.msra.mxu0 0.0
      %665 = vmatprep.subr.mxu0 0.0
      %666 = vmatpush1.msra.mxu0 0.0
      %667 = vmatprep.subr.mxu0 0.0
      %668 = vmatpush1.msra.mxu0 0.0
      %669 = vmatprep.subr.mxu0 0.0
      %670 = vmatpush1.msra.mxu0 0.0
      %671 = vmatprep.subr.mxu0 0.0
      %672 = vmatpush1.msra.mxu0 0.0
      %673 = vmatprep.subr.mxu0 0.0
      %674 = vmatpush1.msra.mxu0 0.0
      %675 = vmatprep.subr.mxu0 0.0
      %676 = vmatpush1.msra.mxu0 0.0
      %677 = vmatprep.subr.mxu0 0.0
      %678 = vmatpush1.msra.mxu0 0.0
      %679 = vmatprep.subr.mxu0 0.0
      %680 = vmatpush1.msra.mxu0 0.0
      %681 = vmatprep.subr.mxu0 0.0
      %682 = vmatpush1.msra.mxu0 0.0
      %683 = vmatprep.subr.mxu0 0.0
      %684 = vmatpush1.msra.mxu0 0.0
      %685 = vmatprep.subr.mxu0 0.0
      %686 = vmatpush1.msra.mxu0 %v556
      %687 = vmatprep.subr.mxu0 0.0
      %688 = vmatpush2.msra.mxu0 0.0
      %689 = vmatprep.subr.mxu0 0.0
      %690 = vmatpush2.msra.mxu0 0.0
      %691 = vmatprep.subr.mxu0 0.0
      %692 = vmatpush2.msra.mxu0 0.0
      %693 = vmatprep.subr.mxu0 0.0
      %694 = vmatpush2.msra.mxu0 0.0
      %695 = vmatprep.subr.mxu0 0.0
      %696 = vmatpush2.msra.mxu0 0.0
      %697 = vmatprep.subr.mxu0 0.0
      %698 = vmatpush2.msra.mxu0 0.0
      %699 = vmatprep.subr.mxu0 0.0
      %700 = vmatpush2.msra.mxu0 0.0
      %701 = vmatprep.subr.mxu0 0.0
      %702 = vmatpush2.msra.mxu0 0.0
      %703 = vmatprep.subr.mxu0 0.0
      %704 = vmatpush2.msra.mxu0 0.0
      %705 = vmatprep.subr.mxu0 0.0
      %706 = vmatpush2.msra.mxu0 0.0
      %707 = vmatprep.subr.mxu0 0.0
      %708 = vmatpush2.msra.mxu0 0.0
      %709 = vmatprep.subr.mxu0 0.0
      %710 = vmatpush2.msra.mxu0 0.0
      %711 = vmatprep.subr.mxu0 0.0
      %712 = vmatpush2.msra.mxu0 0.0
      %713 = vmatprep.subr.mxu0 0.0
      %714 = vmatpush2.msra.mxu0 0.0
      %715 = vmatprep.subr.mxu0 0.0
      %716 = vmatpush2.msra.mxu0 0.0
      %717 = vmatprep.subr.mxu0 0.0
      %718 = vmatpush2.msra.mxu0 0.0
      %719 = vmatprep.mubr.f32.mxu0 0.0
      %720 = vmatmul.mubr.f32.gmra.mxu0 %v653
      %v721 = vpop.f32.mrf.mxu0
      %v722 = vadd.f32 0.0, %v721
      %v723 = vpop.f32.mrf.mxu0
      %724 = vdwg.mxu0
      %725 = vrot.lane.b32.xlu0 %v410, 112
      %v726 = vpop.permute.xlu0 %725
      %727 = vrot.lane.b32.xlu0 %v482, 112
      %v728 = vpop.permute.xlu0 %727
      %v729 = vsel %vm563, %v726, 0
      %v731 = vsel %vm563, %v728, 0
      %733 = vmatprep.subr.mxu0 0.0
      %734 = vmatpush1.xpose.msra.mxu0 0.0
      %735 = vmatprep.subr.mxu0 0.0
      %736 = vmatpush1.xpose.msra.mxu0 0.0
      %737 = vmatprep.subr.mxu0 0.0
      %738 = vmatpush1.xpose.msra.mxu0 0.0
      %739 = vmatprep.subr.mxu0 0.0
      %740 = vmatpush1.xpose.msra.mxu0 0.0
      %741 = vmatprep.subr.mxu0 0.0
      %742 = vmatpush1.xpose.msra.mxu0 0.0
      %743 = vmatprep.subr.mxu0 0.0
      %744 = vmatpush1.xpose.msra.mxu0 0.0
      %745 = vmatprep.subr.mxu0 0.0
      %746 = vmatpush1.xpose.msra.mxu0 0.0
      %747 = vmatprep.subr.mxu0 0.0
      %748 = vmatpush1.xpose.msra.mxu0 0.0
      %749 = vmatprep.subr.mxu0 0.0
      %750 = vmatpush1.xpose.msra.mxu0 0.0
      %751 = vmatprep.subr.mxu0 0.0
      %752 = vmatpush1.xpose.msra.mxu0 0.0
      %753 = vmatprep.subr.mxu0 0.0
      %754 = vmatpush1.xpose.msra.mxu0 0.0
      %755 = vmatprep.subr.mxu0 0.0
      %756 = vmatpush1.xpose.msra.mxu0 0.0
      %757 = vmatprep.subr.mxu0 0.0
      %758 = vmatpush1.xpose.msra.mxu0 0.0
      %759 = vmatprep.subr.mxu0 0.0
      %760 = vmatpush1.xpose.msra.mxu0 0.0
      %761 = vmatprep.subr.mxu0 0.0
      %762 = vmatpush1.xpose.msra.mxu0 0.0
      %763 = vmatprep.subr.mxu0 0.0
      %764 = vmatpush1.xpose.msra.mxu0 %v731
      %765 = vmatprep.subr.mxu0 0.0
      %766 = vmatpush2.xpose.msra.mxu0 0.0
      %767 = vmatprep.subr.mxu0 0.0
      %768 = vmatpush2.xpose.msra.mxu0 0.0
      %769 = vmatprep.subr.mxu0 0.0
      %770 = vmatpush2.xpose.msra.mxu0 0.0
      %771 = vmatprep.subr.mxu0 0.0
      %772 = vmatpush2.xpose.msra.mxu0 0.0
      %773 = vmatprep.subr.mxu0 0.0
      %774 = vmatpush2.xpose.msra.mxu0 0.0
      %775 = vmatprep.subr.mxu0 0.0
      %776 = vmatpush2.xpose.msra.mxu0 0.0
      %777 = vmatprep.subr.mxu0 0.0
      %778 = vmatpush2.xpose.msra.mxu0 0.0
      %779 = vmatprep.subr.mxu0 0.0
      %780 = vmatpush2.xpose.msra.mxu0 0.0
      %781 = vmatprep.subr.mxu0 0.0
      %782 = vmatpush2.xpose.msra.mxu0 0.0
      %783 = vmatprep.subr.mxu0 0.0
      %784 = vmatpush2.xpose.msra.mxu0 0.0
      %785 = vmatprep.subr.mxu0 0.0
      %786 = vmatpush2.xpose.msra.mxu0 0.0
      %787 = vmatprep.subr.mxu0 0.0
      %788 = vmatpush2.xpose.msra.mxu0 0.0
      %789 = vmatprep.subr.mxu0 0.0
      %790 = vmatpush2.xpose.msra.mxu0 0.0
      %791 = vmatprep.subr.mxu0 0.0
      %792 = vmatpush2.xpose.msra.mxu0 0.0
      %793 = vmatprep.subr.mxu0 0.0
      %794 = vmatpush2.xpose.msra.mxu0 0.0
      %795 = vmatprep.subr.mxu0 0.0
      %796 = vmatpush2.xpose.msra.mxu0 0.0
      %797 = vmatprep.mubr.f32.mxu0 0.0
      %798 = vmatmul.mubr.f32.gmra.mxu0 %v729
      %v799 = vpop.f32.mrf.mxu0
      %v800 = vadd.f32 0.0, %v799
      %v801 = vpop.f32.mrf.mxu0
      %802 = vdwg.mxu0
      %v803 = vsel %vm640, %v800, -inf
      %804 = vmax.xlane.f32.xlu0 %v803
      %v805 = vpop.xlane.xlu0 %804
      %v806 = vsub.f32 %v800, %v805
      %v807 = vmul.f32 %v806, 1.442695
      %v808 = vpow.pop %v807
      %v809 = vsel %vm640, %v808, 0.0
      %810 = vadd.xlane.f32.xlu0 %v809
      %v811 = vpop.xlane.xlu0 %810
      %v812 = vrcp.pop %v811
      %v813 = vmul.f32 %v808, %v812
      %815 = vrot.lane.b32.xlu0 %v556, 112
      %v816 = vpop.permute.xlu0 %815
      %v819 = vsel %vm640, %v813, 0
      %821 = vmatprep.subr.mxu0 0.0
      %822 = vmatpush1.msra.mxu0 0.0
      %823 = vmatprep.subr.mxu0 0.0
      %824 = vmatpush1.msra.mxu0 0.0
      %825 = vmatprep.subr.mxu0 0.0
      %826 = vmatpush1.msra.mxu0 0.0
      %827 = vmatprep.subr.mxu0 0.0
      %828 = vmatpush1.msra.mxu0 0.0
      %829 = vmatprep.subr.mxu0 0.0
      %830 = vmatpush1.msra.mxu0 0.0
      %831 = vmatprep.subr.mxu0 0.0
      %832 = vmatpush1.msra.mxu0 0.0
      %833 = vmatprep.subr.mxu0 0.0
      %834 = vmatpush1.msra.mxu0 0.0
      %835 = vmatprep.subr.mxu0 0.0
      %836 = vmatpush1.msra.mxu0 0.0
      %837 = vmatprep.subr.mxu0 0.0
      %838 = vmatpush1.msra.mxu0 0.0
      %839 = vmatprep.subr.mxu0 0.0
      %840 = vmatpush1.msra.mxu0 0.0
      %841 = vmatprep.subr.mxu0 0.0
      %842 = vmatpush1.msra.mxu0 0.0
      %843 = vmatprep.subr.mxu0 0.0
      %844 = vmatpush1.msra.mxu0 0.0
      %845 = vmatprep.subr.mxu0 0.0
      %846 = vmatpush1.msra.mxu0 0.0
      %847 = vmatprep.subr.mxu0 0.0
      %848 = vmatpush1.msra.mxu0 0.0
      %849 = vmatprep.subr.mxu0 0.0
      %850 = vmatpush1.msra.mxu0 0.0
      %851 = vmatprep.subr.mxu0 0.0
      %852 = vmatpush1.msra.mxu0 %v816
      %853 = vmatprep.subr.mxu0 0.0
      %854 = vmatpush2.msra.mxu0 0.0
      %855 = vmatprep.subr.mxu0 0.0
      %856 = vmatpush2.msra.mxu0 0.0
      %857 = vmatprep.subr.mxu0 0.0
      %858 = vmatpush2.msra.mxu0 0.0
      %859 = vmatprep.subr.mxu0 0.0
      %860 = vmatpush2.msra.mxu0 0.0
      %861 = vmatprep.subr.mxu0 0.0
      %862 = vmatpush2.msra.mxu0 0.0
      %863 = vmatprep.subr.mxu0 0.0
      %864 = vmatpush2.msra.mxu0 0.0
      %865 = vmatprep.subr.mxu0 0.0
      %866 = vmatpush2.msra.mxu0 0.0
      %867 = vmatprep.subr.mxu0 0.0
      %868 = vmatpush2.msra.mxu0 0.0
      %869 = vmatprep.subr.mxu0 0.0
      %870 = vmatpush2.msra.mxu0 0.0
      %871 = vmatprep.subr.mxu0 0.0
      %872 = vmatpush2.msra.mxu0 0.0
      %873 = vmatprep.subr.mxu0 0.0
      %874 = vmatpush2.msra.mxu0 0.0
      %875 = vmatprep.subr.mxu0 0.0
      %876 = vmatpush2.msra.mxu0 0.0
      %877 = vmatprep.subr.mxu0 0.0
      %878 = vmatpush2.msra.mxu0 0.0
      %879 = vmatprep.subr.mxu0 0.0
      %880 = vmatpush2.msra.mxu0 0.0
      %881 = vmatprep.subr.mxu0 0.0
      %882 = vmatpush2.msra.mxu0 0.0
      %883 = vmatprep.subr.mxu0 0.0
      %884 = vmatpush2.msra.mxu0 0.0
      %885 = vmatprep.mubr.f32.mxu0 0.0
      %886 = vmatmul.mubr.f32.gmra.mxu0 %v819
      %v887 = vpop.f32.mrf.mxu0
      %v888 = vadd.f32 0.0, %v887
      %v889 = vpop.f32.mrf.mxu0
      %890 = vdwg.mxu0
      %v892 = vsel %vm563, %v888, 0
      %894 = vmatprep.subr.mxu0 0.0
      %895 = vmatpush1.msra.mxu0 0.0
      %896 = vmatprep.subr.mxu0 0.0
      %897 = vmatpush1.msra.mxu0 0.0
      %898 = vmatprep.subr.mxu0 0.0
      %899 = vmatpush1.msra.mxu0 0.0
      %900 = vmatprep.subr.mxu0 0.0
      %901 = vmatpush1.msra.mxu0 0.0
      %902 = vmatprep.subr.mxu0 0.0
      %903 = vmatpush1.msra.mxu0 0.0
      %904 = vmatprep.subr.mxu0 0.0
      %905 = vmatpush1.msra.mxu0 0.0
      %906 = vmatprep.subr.mxu0 0.0
      %907 = vmatpush1.msra.mxu0 0.0
      %908 = vmatprep.subr.mxu0 0.0
      %909 = vmatpush1.msra.mxu0 0.0
      %910 = vmatprep.subr.mxu0 0.0
      %911 = vmatpush1.msra.mxu0 0.0
      %912 = vmatprep.subr.mxu0 0.0
      %913 = vmatpush1.msra.mxu0 0.0
      %914 = vmatprep.subr.mxu0 0.0
      %915 = vmatpush1.msra.mxu0 0.0
      %916 = vmatprep.subr.mxu0 0.0
      %917 = vmatpush1.msra.mxu0 0.0
      %918 = vmatprep.subr.mxu0 0.0
      %919 = vmatpush1.msra.mxu0 0.0
      %920 = vmatprep.subr.mxu0 0.0
      %921 = vmatpush1.msra.mxu0 0.0
      %922 = vmatprep.subr.mxu0 0.0
      %923 = vmatpush1.msra.mxu0 %v562
      %924 = vmatprep.subr.mxu0 0.0
      %925 = vmatpush1.msra.mxu0 %v561
      %926 = vmatprep.subr.mxu0 0.0
      %927 = vmatpush2.msra.mxu0 0.0
      %928 = vmatprep.subr.mxu0 0.0
      %929 = vmatpush2.msra.mxu0 0.0
      %930 = vmatprep.subr.mxu0 0.0
      %931 = vmatpush2.msra.mxu0 0.0
      %932 = vmatprep.subr.mxu0 0.0
      %933 = vmatpush2.msra.mxu0 0.0
      %934 = vmatprep.subr.mxu0 0.0
      %935 = vmatpush2.msra.mxu0 0.0
      %936 = vmatprep.subr.mxu0 0.0
      %937 = vmatpush2.msra.mxu0 0.0
      %938 = vmatprep.subr.mxu0 0.0
      %939 = vmatpush2.msra.mxu0 0.0
      %940 = vmatprep.subr.mxu0 0.0
      %941 = vmatpush2.msra.mxu0 0.0
      %942 = vmatprep.subr.mxu0 0.0
      %943 = vmatpush2.msra.mxu0 0.0
      %944 = vmatprep.subr.mxu0 0.0
      %945 = vmatpush2.msra.mxu0 0.0
      %946 = vmatprep.subr.mxu0 0.0
      %947 = vmatpush2.msra.mxu0 0.0
      %948 = vmatprep.subr.mxu0 0.0
      %949 = vmatpush2.msra.mxu0 0.0
      %950 = vmatprep.subr.mxu0 0.0
      %951 = vmatpush2.msra.mxu0 0.0
      %952 = vmatprep.subr.mxu0 0.0
      %953 = vmatpush2.msra.mxu0 0.0
      %954 = vmatprep.subr.mxu0 0.0
      %955 = vmatpush2.msra.mxu0 0.0
      %956 = vmatprep.subr.mxu0 0.0
      %957 = vmatpush2.msra.mxu0 0.0
      %958 = vmatprep.mubr.f32.mxu0 0.0
      %959 = vmatmul.mubr.f32.gmra.mxu0 %v892
      %v960 = vpop.f32.mrf.mxu0
      %v961 = vadd.f32 0.0, %v960
      %v962 = vpop.f32.mrf.mxu0
      %963 = vdwg.mxu0
      %v965 = vsel %vm563, %v722, 0
      %967 = vmatprep.subr.mxu0 0.0
      %968 = vmatpush1.msra.mxu0 0.0
      %969 = vmatprep.subr.mxu0 0.0
      %970 = vmatpush1.msra.mxu0 0.0
      %971 = vmatprep.subr.mxu0 0.0
      %972 = vmatpush1.msra.mxu0 0.0
      %973 = vmatprep.subr.mxu0 0.0
      %974 = vmatpush1.msra.mxu0 0.0
      %975 = vmatprep.subr.mxu0 0.0
      %976 = vmatpush1.msra.mxu0 0.0
      %977 = vmatprep.subr.mxu0 0.0
      %978 = vmatpush1.msra.mxu0 0.0
      %979 = vmatprep.subr.mxu0 0.0
      %980 = vmatpush1.msra.mxu0 0.0
      %981 = vmatprep.subr.mxu0 0.0
      %982 = vmatpush1.msra.mxu0 0.0
      %983 = vmatprep.subr.mxu0 0.0
      %984 = vmatpush1.msra.mxu0 0.0
      %985 = vmatprep.subr.mxu0 0.0
      %986 = vmatpush1.msra.mxu0 0.0
      %987 = vmatprep.subr.mxu0 0.0
      %988 = vmatpush1.msra.mxu0 0.0
      %989 = vmatprep.subr.mxu0 0.0
      %990 = vmatpush1.msra.mxu0 0.0
      %991 = vmatprep.subr.mxu0 0.0
      %992 = vmatpush1.msra.mxu0 0.0
      %993 = vmatprep.subr.mxu0 0.0
      %994 = vmatpush1.msra.mxu0 0.0
      %995 = vmatprep.subr.mxu0 0.0
      %996 = vmatpush1.msra.mxu0 %v560
      %997 = vmatprep.subr.mxu0 0.0
      %998 = vmatpush1.msra.mxu0 %v559
      %999 = vmatprep.subr.mxu0 0.0
      %1000 = vmatpush2.msra.mxu0 0.0
      %1001 = vmatprep.subr.mxu0 0.0
      %1002 = vmatpush2.msra.mxu0 0.0
      %1003 = vmatprep.subr.mxu0 0.0
      %1004 = vmatpush2.msra.mxu0 0.0
      %1005 = vmatprep.subr.mxu0 0.0
      %1006 = vmatpush2.msra.mxu0 0.0
      %1007 = vmatprep.subr.mxu0 0.0
      %1008 = vmatpush2.msra.mxu0 0.0
      %1009 = vmatprep.subr.mxu0 0.0
      %1010 = vmatpush2.msra.mxu0 0.0
      %1011 = vmatprep.subr.mxu0 0.0
      %1012 = vmatpush2.msra.mxu0 0.0
      %1013 = vmatprep.subr.mxu0 0.0
      %1014 = vmatpush2.msra.mxu0 0.0
      %1015 = vmatprep.subr.mxu0 0.0
      %1016 = vmatpush2.msra.mxu0 0.0
      %1017 = vmatprep.subr.mxu0 0.0
      %1018 = vmatpush2.msra.mxu0 0.0
      %1019 = vmatprep.subr.mxu0 0.0
      %1020 = vmatpush2.msra.mxu0 0.0
      %1021 = vmatprep.subr.mxu0 0.0
      %1022 = vmatpush2.msra.mxu0 0.0
      %1023 = vmatprep.subr.mxu0 0.0
      %1024 = vmatpush2.msra.mxu0 0.0
      %1025 = vmatprep.subr.mxu0 0.0
      %1026 = vmatpush2.msra.mxu0 0.0
      %1027 = vmatprep.subr.mxu0 0.0
      %1028 = vmatpush2.msra.mxu0 0.0
      %1029 = vmatprep.subr.mxu0 0.0
      %1030 = vmatpush2.msra.mxu0 0.0
      %1031 = vmatprep.mubr.f32.mxu0 0.0
      %1032 = vmatmul.mubr.f32.gmra.mxu0 %v965
      %v1033 = vpop.f32.mrf.mxu0
      %v1034 = vadd.f32 %v961, %v1033
      %v1035 = vpop.f32.mrf.mxu0
      %1036 = vdwg.mxu0
      %v1037 = vld [vmem:[%s7] sm:$0x1]
      %v1039 = vlaneseq
      %v1040 = vshrl.u32 %v1039, 7
      %v1041 = vsub.s32 0, %v1040
      %v1042 = vrot.slane %v1037, %v1041
      %v1044 = vadd.f32 %v1034, %v1042
      %v1045 = vadd.f32 %v1044, %v301
      %1046 = vst.msk [vmem:[%s300] sm:$0xff] %vm304, %v1045
      %p1047 = scmp.lt.s32.totalorder %s19, 1
      %s1048 = scalar_select %p1047, %s19, 1
      %s1049 = smul.addr %s1048, 8
      %s1050 = scalar_lea.vmem %s8, %s1049
      // Predicated region
      $region53: #{retrieval_patch_transformer.6} parent=51 // pred_check
        %p1051 = pneg %p210
      $region54: #{retrieval_patch_transformer.6} parent=51 // pred_check_branch
        %1053 = sbr.rel (%p1051) target = $region56
      $region55: #{retrieval_patch_transformer.6} parent=51 // pred_region
        _
      $region56: #{retrieval_patch_transformer.6} parent=51 // pred_fallthru
        _
    $region52: #{retrieval_patch_transformer.6} parent=5 // pred_fallthru
      _
    %p1054 = scmp.le.s32.totalorder 2, %s14
    // Predicated region
    $region57: #{retrieval_patch_transformer.6} parent=5 // pred_check
      %p1055 = pneg %p1054
    $region58: #{retrieval_patch_transformer.6} parent=5 // pred_check_branch
      %1057 = sbr.rel (%p1055) target = $region60
    $region59: #{retrieval_patch_transformer.6} parent=5 // pred_region
      %s1058 = ssub.s32 %s14, 2
      // Predicated region
      $region61: #{retrieval_patch_transformer.6} parent=59 // pred_check
        %p1059 = pneg %p216
      $region62: #{retrieval_patch_transformer.6} parent=59 // pred_check_branch
        %1061 = sbr.rel (%p1059) target = $region64
      $region63: #{retrieval_patch_transformer.6} parent=59 // pred_region
        %p1062 = scmp.lt.s32.totalorder %s20, 1
        %s1063 = scalar_select %p1062, %s20, 1
        %s1064 = smul.addr %s1063, 8
        %s1065 = scalar_lea.vmem %s8, %s1064
      $region64: #{retrieval_patch_transformer.6} parent=59 // pred_fallthru
        _
    $region60: #{retrieval_patch_transformer.6} parent=5 // pred_fallthru
      _
  $region6: #{retrieval_patch_transformer.6} parent=0 // loop_footer
    %s18 = sadd.s32 1, %s14
  $region7: #{retrieval_patch_transformer.6} parent=0 // loop_footer_branch
    %13 = sbr.rel target = $region3
  $region8: #{retrieval_patch_transformer.6} parent=0 // loop_exit
    _

// kernel: retrieval_patch_transformer.9
$region0: #{retrieval_patch_transformer.9}
  #allocation0 [shape = 'u32[]', space=smem, size = 0x4, offset = 0x4, fixed_abs, tag = 'smem constant byte address 0x4 - core index']
  #allocation1 [shape = 'u32[144,128]{1,0:T(1,128)}', space=vmem, size = 0x12000, scoped, tag = 'internal scratch']
  %s0 = inlined_call_operand.vmem [shape: f32[16,32], index: 0, kind: input, shape index: {}]
  %s1 = inlined_call_operand.vmem [shape: f32[32,16], index: 1, kind: input, shape index: {}]
  %s2 = inlined_call_operand.vmem [shape: f32[1,16], index: 2, kind: input, shape index: {}]
  %s3 = inlined_call_operand.hbm [shape: f32[16,16], index: 3, kind: output, shape index: {}]
  %s4 = sld [smem:[#allocation0]]
  $region22: #{retrieval_patch_transformer.9} parent=0
    _
  %s6 = ssub.s32 1, %s4
  %s7 = scalar_select 0, %s6, %s4
  $region1: #{retrieval_patch_transformer.9} parent=0
    #allocation2 [shape = 'u8[8192]{0}', space=vmem, size = 0x2000, scoped, tag = 'output window, operand 0, single buffered']
    #allocation3 [shape = 's32[1]{0}', space=sflag, size = 0x4, scoped, tag = 'scoped memory for retrieval_patch_transformer.9']
    %8 = vsyncpa [#allocation3], 0
    // Predicated region
    $region2: #{retrieval_patch_transformer.9} parent=1 // pred_check
      _
    $region3: #{retrieval_patch_transformer.9} parent=1 // pred_check_branch
      %10 = sbr.rel (0) target = $region5
    $region4: #{retrieval_patch_transformer.9} parent=1 // pred_region
      _
    $region5: #{retrieval_patch_transformer.9} parent=1 // pred_fallthru
      _
    // Predicated region
    $region6: #{retrieval_patch_transformer.9} parent=1 // pred_check
      _
    $region7: #{retrieval_patch_transformer.9} parent=1 // pred_check_branch
      %12 = sbr.rel (0) target = $region9
    $region8: #{retrieval_patch_transformer.9} parent=1 // pred_region
      _
    $region9: #{retrieval_patch_transformer.9} parent=1 // pred_fallthru
      _
    // Predicated region
    $region10: #{retrieval_patch_transformer.9} parent=1 // pred_check
      _
    $region11: #{retrieval_patch_transformer.9} parent=1 // pred_check_branch
      %14 = sbr.rel (0) target = $region13
    $region12: #{retrieval_patch_transformer.9} parent=1 // pred_region
      _
    $region13: #{retrieval_patch_transformer.9} parent=1 // pred_fallthru
      _
    %v15 = vld [vmem:[%s0] sm:$0xff]
    %v16 = vld [vmem:[%s0 + $0x8] sm:$0xff]
    %v17 = vld [vmem:[%s1] sm:$0xff]
    %v18 = vld [vmem:[%s1 + $0x8] sm:$0xff]
    %v19 = vld [vmem:[%s1 + $0x10] sm:$0xff]
    %v20 = vld [vmem:[%s1 + $0x18] sm:$0xff]
    %v21 = vld [vmem:[%s2] sm:$0x1]
    %v23 = vlaneseq
    %v24 = vshrl.u32 %v23, 7
    %v25 = vsub.s32 0, %v24
    %v26 = vrot.slane %v21, %v25
    %vm28 = vcmask 261120
    %v30 = vsel %vm28, %v15, 0
    %v33 = vsel %vm28, %v16, 0
    %35 = vmatprep.subr.mxu0 0.0
    %36 = vmatpush1.msra.mxu0 0.0
    %37 = vmatprep.subr.mxu0 0.0
    %38 = vmatpush1.msra.mxu0 0.0
    %39 = vmatprep.subr.mxu0 0.0
    %40 = vmatpush1.msra.mxu0 0.0
    %41 = vmatprep.subr.mxu0 0.0
    %42 = vmatpush1.msra.mxu0 0.0
    %43 = vmatprep.subr.mxu0 0.0
    %44 = vmatpush1.msra.mxu0 0.0
    %45 = vmatprep.subr.mxu0 0.0
    %46 = vmatpush1.msra.mxu0 0.0
    %47 = vmatprep.subr.mxu0 0.0
    %48 = vmatpush1.msra.mxu0 0.0
    %49 = vmatprep.subr.mxu0 0.0
    %50 = vmatpush1.msra.mxu0 0.0
    %51 = vmatprep.subr.mxu0 0.0
    %52 = vmatpush1.msra.mxu0 0.0
    %53 = vmatprep.subr.mxu0 0.0
    %54 = vmatpush1.msra.mxu0 0.0
    %55 = vmatprep.subr.mxu0 0.0
    %56 = vmatpush1.msra.mxu0 0.0
    %57 = vmatprep.subr.mxu0 0.0
    %58 = vmatpush1.msra.mxu0 0.0
    %59 = vmatprep.subr.mxu0 0.0
    %60 = vmatpush1.msra.mxu0 %v20
    %61 = vmatprep.subr.mxu0 0.0
    %62 = vmatpush1.msra.mxu0 %v19
    %63 = vmatprep.subr.mxu0 0.0
    %64 = vmatpush1.msra.mxu0 %v18
    %65 = vmatprep.subr.mxu0 0.0
    %66 = vmatpush1.msra.mxu0 %v17
    %67 = vmatprep.subr.mxu0 0.0
    %68 = vmatpush2.msra.mxu0 0.0
    %69 = vmatprep.subr.mxu0 0.0
    %70 = vmatpush2.msra.mxu0 0.0
    %71 = vmatprep.subr.mxu0 0.0
    %72 = vmatpush2.msra.mxu0 0.0
    %73 = vmatprep.subr.mxu0 0.0
    %74 = vmatpush2.msra.mxu0 0.0
    %75 = vmatprep.subr.mxu0 0.0
    %76 = vmatpush2.msra.mxu0 0.0
    %77 = vmatprep.subr.mxu0 0.0
    %78 = vmatpush2.msra.mxu0 0.0
    %79 = vmatprep.subr.mxu0 0.0
    %80 = vmatpush2.msra.mxu0 0.0
    %81 = vmatprep.subr.mxu0 0.0
    %82 = vmatpush2.msra.mxu0 0.0
    %83 = vmatprep.subr.mxu0 0.0
    %84 = vmatpush2.msra.mxu0 0.0
    %85 = vmatprep.subr.mxu0 0.0
    %86 = vmatpush2.msra.mxu0 0.0
    %87 = vmatprep.subr.mxu0 0.0
    %88 = vmatpush2.msra.mxu0 0.0
    %89 = vmatprep.subr.mxu0 0.0
    %90 = vmatpush2.msra.mxu0 0.0
    %91 = vmatprep.subr.mxu0 0.0
    %92 = vmatpush2.msra.mxu0 0.0
    %93 = vmatprep.subr.mxu0 0.0
    %94 = vmatpush2.msra.mxu0 0.0
    %95 = vmatprep.subr.mxu0 0.0
    %96 = vmatpush2.msra.mxu0 0.0
    %97 = vmatprep.subr.mxu0 0.0
    %98 = vmatpush2.msra.mxu0 0.0
    %99 = vmatprep.mubr.f32.mxu0 0.0
    %100 = vmatmul.mubr.f32.gmra.mxu0 %v30
    %v101 = vpop.f32.mrf.mxu0
    %v102 = vadd.f32 %v26, %v101
    %v103 = vpop.f32.mrf.mxu0
    %104 = vmatprep.mubr.f32.mxu0 0.0
    %105 = vmatmul.mubr.f32.gmra.mxu0 %v33
    %v106 = vpop.f32.mrf.mxu0
    %v107 = vadd.f32 %v26, %v106
    %v108 = vpop.f32.mrf.mxu0
    %109 = vdwg.mxu0
    %vm110 = vcmask 130048
    %111 = vst.msk [vmem:[#allocation2] sm:$0xff] %vm110, %v102
    %112 = vst.msk [vmem:[#allocation2 + $0x8] sm:$0xff] %vm110, %v107
    // Predicated region
    $region14: #{retrieval_patch_transformer.9} parent=1 // pred_check
      _
    $region15: #{retrieval_patch_transformer.9} parent=1 // pred_check_branch
      %114 = sbr.rel (0) target = $region17
    $region16: #{retrieval_patch_transformer.9} parent=1 // pred_region
      %s116 = ssub.s32 256, 256
      %117 = vsyncadd [#allocation3], %s116
      %s118 = sshll.u32 [#allocation2], 4
      %s119 = int_to_ptr.vmem [resolvable:$true] %s118
      %124 = dma.vmem_to_hbm [thread:$0]  %s119, 256, %s3, [#allocation3], 128, 128, 8
    $region17: #{retrieval_patch_transformer.9} parent=1 // pred_fallthru
      _
    // Predicated region
    $region18: #{retrieval_patch_transformer.9} parent=1 // pred_check
      _
    $region19: #{retrieval_patch_transformer.9} parent=1 // pred_check_branch
      %126 = sbr.rel (0) target = $region21
    $region20: #{retrieval_patch_transformer.9} parent=1 // pred_region
      %127 = dma.done [#allocation3], 256
    $region21: #{retrieval_patch_transformer.9} parent=1 // pred_fallthru
      _
    %128 = vsyncpa [#allocation3], 1

</llo_original>
